<compile_context>
chip_gen: v7x
topology: tpu7x:2x2x1
jax: 0.10.0
libtpu: 0.0.40
codegen_flags: <defaults>
</compile_context>

<pallas_src>
import functools

import jax
import jax.numpy as jnp
import numpy as np
from jax import lax
from jax.experimental import pallas as pl
from jax.experimental.pallas import tpu as pltpu

BN_EPS = 1e-5


def _round_up(x, m):
    return ((x + m - 1) // m) * m


# ---------------------------------------------------------------------------
# Kernel 1: K-tiled matmul fused with per-output-channel affine (BN / bias)
# ---------------------------------------------------------------------------
def _matmul_affine_kernel(a_ref, b_ref, scale_ref, shift_ref, o_ref, acc_ref):
    k = pl.program_id(1)

    @pl.when(k == 0)
    def _init():
        acc_ref[...] = jnp.zeros_like(acc_ref)

    acc_ref[...] += jnp.dot(a_ref[...], b_ref[...],
                            preferred_element_type=jnp.float32)

    @pl.when(k == pl.num_programs(1) - 1)
    def _finalize():
        o_ref[...] = (acc_ref[...] * scale_ref[...] + shift_ref[...]).astype(o_ref.dtype)


def matmul_affine(a, b, scale, shift, out_dtype=jnp.bfloat16,
                  tile_m=256, tile_k=512):
    """out = (a @ b) * scale + shift, scale/shift broadcast over rows.

    bf16 MXU operands, f32 accumulation, K-tiled with VMEM accumulator.
    """
    M, K = a.shape
    N = b.shape[1]
    a = a.astype(jnp.bfloat16)
    b = b.astype(jnp.bfloat16)

    Mp = _round_up(M, tile_m)
    if Mp != M:
        a = jnp.pad(a, ((0, Mp - M), (0, 0)))

    if K <= tile_k:
        tk, Kp = K, K
    else:
        tk = tile_k
        Kp = _round_up(K, tk)
        if Kp != K:
            a = jnp.pad(a, ((0, 0), (0, Kp - K)))
            b = jnp.pad(b, ((0, Kp - K), (0, 0)))

    scale = scale.reshape(1, N).astype(jnp.float32)
    shift = shift.reshape(1, N).astype(jnp.float32)

    out = pl.pallas_call(
        _matmul_affine_kernel,
        out_shape=jax.ShapeDtypeStruct((Mp, N), out_dtype),
        grid=(Mp // tile_m, Kp // tk),
        in_specs=[
            pl.BlockSpec((tile_m, tk), lambda i, k: (i, k)),
            pl.BlockSpec((tk, N), lambda i, k: (k, 0)),
            pl.BlockSpec((1, N), lambda i, k: (0, 0)),
            pl.BlockSpec((1, N), lambda i, k: (0, 0)),
        ],
        out_specs=pl.BlockSpec((tile_m, N), lambda i, k: (i, 0)),
        scratch_shapes=[pltpu.VMEM((tile_m, N), jnp.float32)],
        compiler_params=pltpu.CompilerParams(
            dimension_semantics=("parallel", "arbitrary")),
    )(a, b, scale, shift)
    return out if Mp == M else out[:M]


# ---------------------------------------------------------------------------
# Kernel 2: 3x3 dilated conv + BN affine via row-tap reduction grid axis
# (column taps are static slices inside the kernel -> no im2col)
# ---------------------------------------------------------------------------
def _conv3x3_kernel(xs_ref, w_ref, scale_ref, shift_ref, o_ref, acc_ref, *, d, W):
    ky = pl.program_id(2)

    @pl.when(ky == 0)
    def _init():
        acc_ref[...] = jnp.zeros_like(acc_ref)

    xblk = xs_ref[0, 0]                       # (th, W + 2d, Cin) bf16
    th = xblk.shape[0]
    cin = xblk.shape[2]
    acc = acc_ref[...]
    for kx in range(3):                       # column taps: static slices in VMEM
        a = xblk[:, kx * d:kx * d + W, :].reshape(th * W, cin)
        acc = acc + jnp.dot(a, w_ref[0, kx], preferred_element_type=jnp.float32)
    acc_ref[...] = acc

    @pl.when(ky == 2)
    def _finalize():
        o_ref[...] = (acc_ref[...] * scale_ref[...] + shift_ref[...]).astype(o_ref.dtype)


def conv3x3_bn(x_nhwc, w_hwio, scale, shift, dilation, out_dtype=jnp.bfloat16):
    """3x3 conv (pad=dilation) + folded-BN affine -> (N*H*W, Cout)."""
    N, H, W, Cin = x_nhwc.shape
    Cout = w_hwio.shape[-1]
    d = dilation

    xb = x_nhwc.astype(jnp.bfloat16)
    xp = jnp.pad(xb, ((0, 0), (d, d), (d, d), (0, 0)))
    # 3 row-shifted, W-padded bf16 views (vs. a 9x-inflated f32 im2col tensor).
    xs = jnp.stack([xp[:, ky * d:ky * d + H, :, :] for ky in range(3)], axis=0)
    Wp = W + 2 * d

    th = H                                    # pick a row tile with th*W ~ 256 rows
    while th % 2 == 0 and th * W > 256:
        th //= 2
    rows_per_img = H // th
    tmw = th * W
    M = N * H * W

    wq = w_hwio.astype(jnp.bfloat16)          # (3, 3, Cin, Cout)
    scale = scale.reshape(1, Cout).astype(jnp.float32)
    shift = shift.reshape(1, Cout).astype(jnp.float32)

    kernel = functools.partial(_conv3x3_kernel, d=d, W=W)
    return pl.pallas_call(
        kernel,
        out_shape=jax.ShapeDtypeStruct((M, Cout), out_dtype),
        grid=(N, rows_per_img, 3),
        in_specs=[
            pl.BlockSpec((1, 1, th, Wp, Cin), lambda n, i, ky: (ky, n, i, 0, 0)),
            pl.BlockSpec((1, 3, Cin, Cout), lambda n, i, ky: (ky, 0, 0, 0)),
            pl.BlockSpec((1, Cout), lambda n, i, ky: (0, 0)),
            pl.BlockSpec((1, Cout), lambda n, i, ky: (0, 0)),
        ],
        out_specs=pl.BlockSpec(
            (tmw, Cout), lambda n, i, ky: (n * rows_per_img + i, 0)),
        scratch_shapes=[pltpu.VMEM((tmw, Cout), jnp.float32)],
        compiler_params=pltpu.CompilerParams(
            dimension_semantics=("parallel", "parallel", "arbitrary")),
    )(xs, wq, scale, shift)


# ---------------------------------------------------------------------------
# Kernel 3: flash-style self-attention (key == query, online softmax)
# ---------------------------------------------------------------------------
def _flash_attn_kernel(q_ref, k_ref, v_ref, o_ref, m_sc, l_sc, acc_sc, *, scale):
    ki = pl.program_id(2)

    @pl.when(ki == 0)
    def _init():
        m_sc[...] = jnp.full_like(m_sc, -jnp.inf)
        l_sc[...] = jnp.zeros_like(l_sc)
        acc_sc[...] = jnp.zeros_like(acc_sc)

    q = q_ref[0]                              # (tq, Kc) bf16
    k = k_ref[0]                              # (tk, Kc) bf16 (same tensor as q)
    v = v_ref[0]                              # (tk, Vc) bf16
    s = lax.dot_general(q, k, (((1,), (1,)), ((), ())),
                        preferred_element_type=jnp.float32) * scale
    m_prev = m_sc[...]
    m_new = jnp.maximum(m_prev, jnp.max(s, axis=-1, keepdims=True))
    alpha = jnp.exp(m_prev - m_new)
    p = jnp.exp(s - m_new)
    l_sc[...] = alpha * l_sc[...] + jnp.sum(p, axis=-1, keepdims=True)
    acc_sc[...] = alpha * acc_sc[...] + jnp.dot(
        p.astype(v.dtype), v, preferred_element_type=jnp.float32)
    m_sc[...] = m_new

    @pl.when(ki == pl.num_programs(2) - 1)
    def _finalize():
        o_ref[0] = (acc_sc[...] *
                    pl.reciprocal(l_sc[...], approx=True)).astype(o_ref.dtype)


def flash_self_attention(qk, v, key_channels, tile_q=256, tile_kv=256):
    """qk (B,HW,Kc) used as both query and key, v (B,HW,Vc) -> (B,HW,Vc) f32."""
    B, HW, Kc = qk.shape
    Vc = v.shape[-1]
    if HW % tile_q != 0:
        tile_q = HW
    if HW % tile_kv != 0:
        tile_kv = HW
    qk = qk.astype(jnp.bfloat16)
    v = v.astype(jnp.bfloat16)
    kernel = functools.partial(_flash_attn_kernel,
                               scale=float(key_channels) ** -0.5)
    return pl.pallas_call(
        kernel,
        out_shape=jax.ShapeDtypeStruct((B, HW, Vc), jnp.float32),
        grid=(B, HW // tile_q, HW // tile_kv),
        in_specs=[
            pl.BlockSpec((1, tile_q, Kc), lambda b, qi, ki: (b, qi, 0)),
            pl.BlockSpec((1, tile_kv, Kc), lambda b, qi, ki: (b, ki, 0)),
            pl.BlockSpec((1, tile_kv, Vc), lambda b, qi, ki: (b, ki, 0)),
        ],
        out_specs=pl.BlockSpec((1, tile_q, Vc), lambda b, qi, ki: (b, qi, 0)),
        scratch_shapes=[
            pltpu.VMEM((tile_q, 1), jnp.float32),
            pltpu.VMEM((tile_q, 1), jnp.float32),
            pltpu.VMEM((tile_q, Vc), jnp.float32),
        ],
        compiler_params=pltpu.CompilerParams(
            dimension_semantics=("parallel", "parallel", "arbitrary")),
    )(qk, qk, v)


# ---------------------------------------------------------------------------
# Kernel 4: fused "concat + 1x1 conv + BN" as 5 accumulated matmuls
# ---------------------------------------------------------------------------
def _fuse_concat_matmul_kernel(f1, f2, f3, f4, f5, w_ref, scale_ref, shift_ref, o_ref):
    acc = jnp.dot(f1[...], w_ref[0], preferred_element_type=jnp.float32)
    acc = acc + jnp.dot(f2[...], w_ref[1], preferred_element_type=jnp.float32)
    acc = acc + jnp.dot(f3[...], w_ref[2], preferred_element_type=jnp.float32)
    acc = acc + jnp.dot(f4[...], w_ref[3], preferred_element_type=jnp.float32)
    acc = acc + jnp.dot(f5[...], w_ref[4], preferred_element_type=jnp.float32)
    o_ref[...] = (acc * scale_ref[...] + shift_ref[...]).astype(o_ref.dtype)


def fused_concat_matmul(feats, w_out, scale, shift, out_dtype=jnp.float32, tile_m=256):
    M, C = feats[0].shape
    nb = len(feats)
    OF = w_out.shape[-1]
    Mp = _round_up(M, tile_m)
    fs = []
    for f in feats:
        f = f.astype(jnp.bfloat16)
        if Mp != M:
            f = jnp.pad(f, ((0, Mp - M), (0, 0)))
        fs.append(f)
    w5 = w_out.reshape(nb, C, OF).astype(jnp.bfloat16)
    scale = scale.reshape(1, OF).astype(jnp.float32)
    shift = shift.reshape(1, OF).astype(jnp.float32)

    in_specs = [pl.BlockSpec((tile_m, C), lambda i: (i, 0)) for _ in range(nb)]
    in_specs += [
        pl.BlockSpec((nb, C, OF), lambda i: (0, 0, 0)),
        pl.BlockSpec((1, OF), lambda i: (0, 0)),
        pl.BlockSpec((1, OF), lambda i: (0, 0)),
    ]
    out = pl.pallas_call(
        _fuse_concat_matmul_kernel,
        out_shape=jax.ShapeDtypeStruct((Mp, OF), out_dtype),
        grid=(Mp // tile_m,),
        in_specs=in_specs,
        out_specs=pl.BlockSpec((tile_m, OF), lambda i: (i, 0)),
        compiler_params=pltpu.CompilerParams(dimension_semantics=("parallel",)),
    )(*fs, w5, scale, shift)
    return out if Mp == M else out[:M]


# ---------------------------------------------------------------------------
# Glue (plain JAX): BN folding, parameter init
# ---------------------------------------------------------------------------
def fold_bn(gamma, beta, mean, var, conv_bias=None):
    scale = gamma / jnp.sqrt(var + BN_EPS)
    b = conv_bias if conv_bias is not None else 0.0
    shift = scale * (b - mean) + beta
    return scale, shift


def init_params(key, in_features, out_features):
    internal = in_features // 4
    key_ch = internal // 2
    val_ch = internal
    keys = iter(jax.random.split(key, 64))

    def w(shape, s=0.1):
        return jax.random.normal(next(keys), shape, jnp.float32) * s

    def bn(c):
        return dict(
            gamma=1.0 + 0.1 * jax.random.normal(next(keys), (c,), jnp.float32),
            beta=0.1 * jax.random.normal(next(keys), (c,), jnp.float32),
            mean=0.1 * jax.random.normal(next(keys), (c,), jnp.float32),
            var=jax.random.uniform(next(keys), (c,), jnp.float32, 0.5, 1.5),
        )

    p = {}
    # context branch: conv3x3(pad=1, bias=True) + BN + SelfAttentionBlock
    p['wc'] = w((3, 3, in_features, internal))      # HWIO
    p['bc'] = w((internal,))
    p['bnc'] = bn(internal)
    p['w_key'] = w((internal, key_ch))
    p['b_key'] = w((key_ch,))
    p['bnk'] = bn(key_ch)
    p['w_value'] = w((internal, val_ch))
    p['b_value'] = w((val_ch,))
    p['w_W'] = jnp.zeros((val_ch, internal), jnp.float32)   # nn.init.constant_(W.weight, 0)
    p['b_W'] = jnp.zeros((internal,), jnp.float32)          # nn.init.constant_(W.bias, 0)
    # parallel ASPP branches
    p['w2'] = w((in_features, internal)); p['bn2'] = bn(internal)
    p['w3'] = w((3, 3, in_features, internal)); p['bn3'] = bn(internal)
    p['w4'] = w((3, 3, in_features, internal)); p['bn4'] = bn(internal)
    p['w5'] = w((3, 3, in_features, internal)); p['bn5'] = bn(internal)
    # fusion conv + BN (+ dropout)
    p['w_out'] = w((5 * internal, out_features)); p['bn_out'] = bn(out_features)
    p['internal'], p['key_ch'], p['val_ch'] = internal, key_ch, val_ch
    return p


# ---------------------------------------------------------------------------
# Forward pass (mirrors ASP_OC_Module.forward for a single tensor input)
# ---------------------------------------------------------------------------
def asp_oc_forward(x_nchw, p, dilations=(2, 5, 9)):
    x = jnp.transpose(x_nchw, (0, 2, 3, 1)).astype(jnp.float32)  # NHWC
    N, H, W, Cin = x.shape
    M, HW = N * H * W, H * W
    internal, key_ch, val_ch = p['internal'], p['key_ch'], p['val_ch']
    out_features = p['w_out'].shape[-1]
    x_flat = x.reshape(M, Cin)

    # ----- feat1: context branch (3x3 conv + BN, no im2col) -----
    sc, sh = fold_bn(**p['bnc'], conv_bias=p['bc'])
    ctx_in = conv3x3_bn(x, p['wc'], sc, sh, dilation=1)              # (M, internal) bf16

    # SelfAttentionBlock (scale=1 -> no pooling / interpolation); key == query
    value = matmul_affine(ctx_in, p['w_value'],
                          jnp.ones((val_ch,), jnp.float32), p['b_value'])
    sk, shk = fold_bn(**p['bnk'], conv_bias=p['b_key'])
    keyf = matmul_affine(ctx_in, p['w_key'], sk, shk)
    context = flash_self_attention(keyf.reshape(N, HW, key_ch),
                                   value.reshape(N, HW, val_ch), key_ch)  # f32
    feat1 = matmul_affine(context.reshape(M, val_ch), p['w_W'],
                          jnp.ones((internal,), jnp.float32), p['b_W'])   # zero-init W conv

    # ----- feat2: 1x1 conv + BN -----
    s2, b2 = fold_bn(**p['bn2'])
    feat2 = matmul_affine(x_flat, p['w2'], s2, b2)

    # ----- feat3/4/5: dilated 3x3 conv + BN (no im2col) -----
    feats_d = []
    for d, wk, bnk_ in zip(dilations, ('w3', 'w4', 'w5'), ('bn3', 'bn4', 'bn5')):
        s_, b_ = fold_bn(**p[bnk_])
        feats_d.append(conv3x3_bn(x, p[wk], s_, b_, dilation=d))
    feat3, feat4, feat5 = feats_d

    # ----- fused concat + 1x1 conv + BN (no (M, 5*internal) tensor in HBM) -----
    so, bo = fold_bn(**p['bn_out'])
    out = fused_concat_matmul([feat1, feat2, feat3, feat4, feat5],
                              p['w_out'], so, bo)                    # (M, OF) f32
    # TODO(synk): Dropout2d(0.1) is identity in eval mode; training-mode channel dropout not modeled.
    return jnp.transpose(out.reshape(N, H, W, out_features), (0, 3, 1, 2)), context


# ---------------------------------------------------------------------------
# Pure-JAX f32 reference (for verification only)
# ---------------------------------------------------------------------------
def _bn_apply(y, bn):
    return (y - bn['mean']) / jnp.sqrt(bn['var'] + BN_EPS) * bn['gamma'] + bn['beta']


def _conv_nhwc(x, w_hwio, bias=None, dilation=1):
    kH = w_hwio.shape[0]
    pad = [(dilation, dilation)] * 2 if kH == 3 else [(0, 0)] * 2
    y = lax.conv_general_dilated(x, w_hwio, (1, 1), padding=pad,
                                 rhs_dilation=(dilation, dilation),
                                 dimension_numbers=('NHWC', 'HWIO', 'NHWC'))
    return y if bias is None else y + bias


def reference_forward(x_nchw, p, dilations=(2, 5, 9)):
    x = jnp.transpose(x_nchw, (0, 2, 3, 1)).astype(jnp.float32)
    N, H, W, Cin = x.shape
    internal, key_ch, val_ch = p['internal'], p['key_ch'], p['val_ch']
    ctx_in = _bn_apply(_conv_nhwc(x, p['wc'], p['bc'], 1), p['bnc'])
    value = _conv_nhwc(ctx_in, p['w_value'].reshape(1, 1, internal, val_ch), p['b_value'])
    keyf = _bn_apply(_conv_nhwc(ctx_in, p['w_key'].reshape(1, 1, internal, key_ch), p['b_key']), p['bnk'])
    q = keyf.reshape(N, H * W, key_ch)
    k = jnp.transpose(q, (0, 2, 1))
    v = value.reshape(N, H * W, val_ch)
    sim = jnp.einsum('bqc,bck->bqk', q, k) * (key_ch ** -0.5)
    sim = jax.nn.softmax(sim, axis=-1)
    ctx = jnp.einsum('bqk,bkc->bqc', sim, v)
    feat1 = _conv_nhwc(ctx.reshape(N, H, W, val_ch), p['w_W'].reshape(1, 1, val_ch, internal), p['b_W'])
    feat2 = _bn_apply(_conv_nhwc(x, p['w2'].reshape(1, 1, Cin, internal)), p['bn2'])
    feat3 = _bn_apply(_conv_nhwc(x, p['w3'], None, dilations[0]), p['bn3'])
    feat4 = _bn_apply(_conv_nhwc(x, p['w4'], None, dilations[1]), p['bn4'])
    feat5 = _bn_apply(_conv_nhwc(x, p['w5'], None, dilations[2]), p['bn5'])
    cat = jnp.concatenate([feat1, feat2, feat3, feat4, feat5], axis=-1)
    out = _bn_apply(_conv_nhwc(cat, p['w_out'].reshape(1, 1, 5 * internal, -1)), p['bn_out'])
    return jnp.transpose(out, (0, 3, 1, 2)), ctx


if __name__ == "__main__":
    key = jax.random.PRNGKey(0)
    kx, kp = jax.random.split(key)
    in_features, out_features = 16, 16          # small analogue of 2048/2048
    N, H, W = 2, 16, 16
    x = jax.random.normal(kx, (N, in_features, H, W), jnp.float32)
    params = init_params(kp, in_features, out_features)

    out, ctx = asp_oc_forward(x, params)
    out = jax.block_until_ready(out)
    ctx = jax.block_until_ready(ctx)

    ref_out, ref_ctx = reference_forward(x, params)
    # bf16 MXU operands / bf16 intermediates -> compare against f32 ref with
    # bf16-appropriate tolerances.
    np.testing.assert_allclose(np.asarray(out), np.asarray(ref_out), rtol=5e-2, atol=3e-2)
    np.testing.assert_allclose(np.asarray(ctx), np.asarray(ref_ctx), rtol=5e-2, atol=2e-2)
    print("KERNEL_OK")
</pallas_src>

<mosaic_0001>
module attributes {stable_mosaic.version = 11 : i64} {
  func.func @_conv3x3_kernel(%arg0: i32, %arg1: i32, %arg2: i32, %arg3: memref<1x1x16x18x16xbf16, #tpu.memory_space<vmem>>, %arg4: memref<1x3x16x4xbf16, #tpu.memory_space<vmem>>, %arg5: memref<1x4xf32, #tpu.memory_space<vmem>>, %arg6: memref<1x4xf32, #tpu.memory_space<vmem>>, %arg7: memref<256x4xbf16, #tpu.memory_space<vmem>>, %arg8: memref<256x4xf32, #tpu.memory_space<vmem>>) attributes {dimension_semantics = [#tpu.dimension_semantics<parallel>, #tpu.dimension_semantics<parallel>, #tpu.dimension_semantics<arbitrary>], iteration_bounds = array<i64: 2, 1, 3>, scalar_prefetch = 0 : i64, scratch_operands = 1 : i64, tpu.core_type = #tpu.core_type<tc>, window_params = [{transform_indices = @transform_0, window_bounds = array<i64: 1, 1, 16, 18, 16>}, {transform_indices = @transform_1, window_bounds = array<i64: 1, 3, 16, 4>}, {pipeline_mode = #tpu.pipeline_mode<synchronous>, transform_indices = @transform_2, window_bounds = array<i64: 1, 4>}, {pipeline_mode = #tpu.pipeline_mode<synchronous>, transform_indices = @transform_3, window_bounds = array<i64: 1, 4>}, {transform_indices = @transform_4, window_bounds = array<i64: 256, 4>}]} {
    %c0_i32 = arith.constant 0 : i32
    %0 = arith.cmpi eq, %arg2, %c0_i32 : i32
    %1 = arith.extui %0 : i1 to i32
    %c0_i32_0 = arith.constant 0 : i32
    %2 = arith.cmpi ne, %1, %c0_i32_0 : i32
    scf.if %2 {
      %cst_22 = arith.constant 0.000000e+00 : f32
      %28 = vector.broadcast %cst_22 : f32 to vector<256x4xf32>
      %c0_23 = arith.constant 0 : index
      %c0_24 = arith.constant 0 : index
      %29 = vector.load %arg8[%c0_23, %c0_24] : memref<256x4xf32, #tpu.memory_space<vmem>>, vector<256x4xf32>
      tpu.vector_store %arg8[%c0_23, %c0_24], %28 {strides = array<i32>} : memref<256x4xf32, #tpu.memory_space<vmem>>, vector<256x4xf32>,
    } else {
    }
    %c0 = arith.constant 0 : index
    %c0_1 = arith.constant 0 : index
    %c0_2 = arith.constant 0 : index
    %c0_3 = arith.constant 0 : index
    %c0_4 = arith.constant 0 : index
    %3 = vector.load %arg3[%c0, %c0_1, %c0_2, %c0_3, %c0_4] : memref<1x1x16x18x16xbf16, #tpu.memory_space<vmem>>, vector<1x1x16x18x16xbf16>
    %4 = vector.shape_cast %3 : vector<1x1x16x18x16xbf16> to vector<16x18x16xbf16>
    %c0_5 = arith.constant 0 : index
    %c0_6 = arith.constant 0 : index
    %5 = vector.load %arg8[%c0_5, %c0_6] : memref<256x4xf32, #tpu.memory_space<vmem>>, vector<256x4xf32>
    %6 = vector.extract_strided_slice %4 {offsets = [0, 0, 0], sizes = [16, 16, 16], strides = [1, 1, 1]} : vector<16x18x16xbf16> to vector<16x16x16xbf16>
    %7 = vector.shape_cast %6 : vector<16x16x16xbf16> to vector<256x16xbf16>
    %c0_7 = arith.constant 0 : index
    %c0_8 = arith.constant 0 : index
    %c0_9 = arith.constant 0 : index
    %c0_10 = arith.constant 0 : index
    %8 = vector.load %arg4[%c0_7, %c0_8, %c0_9, %c0_10] : memref<1x3x16x4xbf16, #tpu.memory_space<vmem>>, vector<1x1x16x4xbf16>
    %9 = vector.shape_cast %8 : vector<1x1x16x4xbf16> to vector<16x4xbf16>
    %cst = arith.constant dense<0.000000e+00> : vector<256x4xf32>
    %10 = tpu.matmul %7, %9, %cst {dimension_numbers = #tpu.dot_dimension_numbers<[1], [0], [0], [1], [0, 0, 1, 1], [], []>} : vector<256x16xbf16>, vector<16x4xbf16>, vector<256x4xf32> -> vector<256x4xf32>
    %11 = arith.addf %5, %10 : vector<256x4xf32>
    %12 = vector.extract_strided_slice %4 {offsets = [0, 1, 0], sizes = [16, 16, 16], strides = [1, 1, 1]} : vector<16x18x16xbf16> to vector<16x16x16xbf16>
    %13 = vector.shape_cast %12 : vector<16x16x16xbf16> to vector<256x16xbf16>
    %c0_11 = arith.constant 0 : index
    %c1 = arith.constant 1 : index
    %c0_12 = arith.constant 0 : index
    %c0_13 = arith.constant 0 : index
    %14 = vector.load %arg4[%c0_11, %c1, %c0_12, %c0_13] : memref<1x3x16x4xbf16, #tpu.memory_space<vmem>>, vector<1x1x16x4xbf16>
    %15 = vector.shape_cast %14 : vector<1x1x16x4xbf16> to vector<16x4xbf16>
    %cst_14 = arith.constant dense<0.000000e+00> : vector<256x4xf32>
    %16 = tpu.matmul %13, %15, %cst_14 {dimension_numbers = #tpu.dot_dimension_numbers<[1], [0], [0], [1], [0, 0, 1, 1], [], []>} : vector<256x16xbf16>, vector<16x4xbf16>, vector<256x4xf32> -> vector<256x4xf32>
    %17 = arith.addf %11, %16 : vector<256x4xf32>
    %18 = vector.extract_strided_slice %4 {offsets = [0, 2, 0], sizes = [16, 16, 16], strides = [1, 1, 1]} : vector<16x18x16xbf16> to vector<16x16x16xbf16>
    %19 = vector.shape_cast %18 : vector<16x16x16xbf16> to vector<256x16xbf16>
    %c0_15 = arith.constant 0 : index
    %c2 = arith.constant 2 : index
    %c0_16 = arith.constant 0 : index
    %c0_17 = arith.constant 0 : index
    %20 = vector.load %arg4[%c0_15, %c2, %c0_16, %c0_17] : memref<1x3x16x4xbf16, #tpu.memory_space<vmem>>, vector<1x1x16x4xbf16>
    %21 = vector.shape_cast %20 : vector<1x1x16x4xbf16> to vector<16x4xbf16>
    %cst_18 = arith.constant dense<0.000000e+00> : vector<256x4xf32>
    %22 = tpu.matmul %19, %21, %cst_18 {dimension_numbers = #tpu.dot_dimension_numbers<[1], [0], [0], [1], [0, 0, 1, 1], [], []>} : vector<256x16xbf16>, vector<16x4xbf16>, vector<256x4xf32> -> vector<256x4xf32>
    %23 = arith.addf %17, %22 : vector<256x4xf32>
    %c0_19 = arith.constant 0 : index
    %c0_20 = arith.constant 0 : index
    %24 = vector.load %arg8[%c0_19, %c0_20] : memref<256x4xf32, #tpu.memory_space<vmem>>, vector<256x4xf32>
    tpu.vector_store %arg8[%c0_19, %c0_20], %23 {strides = array<i32>} : memref<256x4xf32, #tpu.memory_space<vmem>>, vector<256x4xf32>,
    %c2_i32 = arith.constant 2 : i32
    %25 = arith.cmpi eq, %arg2, %c2_i32 : i32
    %26 = arith.extui %25 : i1 to i32
    %c0_i32_21 = arith.constant 0 : i32
    %27 = arith.cmpi ne, %26, %c0_i32_21 : i32
    scf.if %27 {
      %c0_22 = arith.constant 0 : index
      %c0_23 = arith.constant 0 : index
      %28 = vector.load %arg8[%c0_22, %c0_23] : memref<256x4xf32, #tpu.memory_space<vmem>>, vector<256x4xf32>
      %c0_24 = arith.constant 0 : index
      %c0_25 = arith.constant 0 : index
      %29 = vector.load %arg5[%c0_24, %c0_25] : memref<1x4xf32, #tpu.memory_space<vmem>>, vector<1x4xf32>
      %30 = vector.broadcast %29 : vector<1x4xf32> to vector<256x4xf32>
      %31 = arith.mulf %28, %30 : vector<256x4xf32>
      %c0_26 = arith.constant 0 : index
      %c0_27 = arith.constant 0 : index
      %32 = vector.load %arg6[%c0_26, %c0_27] : memref<1x4xf32, #tpu.memory_space<vmem>>, vector<1x4xf32>
      %33 = vector.broadcast %32 : vector<1x4xf32> to vector<256x4xf32>
      %34 = arith.addf %31, %33 : vector<256x4xf32>
      %35 = arith.truncf %34 : vector<256x4xf32> to vector<256x4xbf16>
      %c0_28 = arith.constant 0 : index
      %c0_29 = arith.constant 0 : index
      %36 = vector.load %arg7[%c0_28, %c0_29] : memref<256x4xbf16, #tpu.memory_space<vmem>>, vector<256x4xbf16>
      tpu.vector_store %arg7[%c0_28, %c0_29], %35 {strides = array<i32>} : memref<256x4xbf16, #tpu.memory_space<vmem>>, vector<256x4xbf16>,
    } else {
    }
    return
  }
  func.func @transform_0(%arg0: i32, %arg1: i32, %arg2: i32) -> (i32, i32, i32, i32, i32) {
    %c0_i32 = arith.constant 0 : i32
    %c0_i32_0 = arith.constant 0 : i32
    %c0_i32_1 = arith.constant 0 : i32
    return %arg2, %arg0, %arg1, %c0_i32, %c0_i32_0 : i32, i32, i32, i32, i32
  }
  func.func @transform_1(%arg0: i32, %arg1: i32, %arg2: i32) -> (i32, i32, i32, i32) {
    %c0_i32 = arith.constant 0 : i32
    %c0_i32_0 = arith.constant 0 : i32
    %c0_i32_1 = arith.constant 0 : i32
    %c0_i32_2 = arith.constant 0 : i32
    return %arg2, %c0_i32, %c0_i32_0, %c0_i32_1 : i32, i32, i32, i32
  }
  func.func @transform_2(%arg0: i32, %arg1: i32, %arg2: i32) -> (i32, i32) {
    %c0_i32 = arith.constant 0 : i32
    %c0_i32_0 = arith.constant 0 : i32
    %c0_i32_1 = arith.constant 0 : i32
    return %c0_i32, %c0_i32_0 : i32, i32
  }
  func.func @transform_3(%arg0: i32, %arg1: i32, %arg2: i32) -> (i32, i32) {
    %c0_i32 = arith.constant 0 : i32
    %c0_i32_0 = arith.constant 0 : i32
    %c0_i32_1 = arith.constant 0 : i32
    return %c0_i32, %c0_i32_0 : i32, i32
  }
  func.func @transform_4(%arg0: i32, %arg1: i32, %arg2: i32) -> (i32, i32) {
    %c1_i32 = arith.constant 1 : i32
    %0 = arith.muli %arg0, %c1_i32 : i32
    %1 = arith.addi %0, %arg1 : i32
    %c0_i32 = arith.constant 0 : i32
    %c0_i32_0 = arith.constant 0 : i32
    return %1, %c0_i32 : i32, i32
  }
}

</mosaic_0001>

<llo_original>
// kernel: tpu_custom_call.1
$region0: #{tpu_custom_call.1}
  #allocation0 [shape = 'u32[]', space=smem, size = 0x4, offset = 0x4, fixed_abs, tag = 'smem constant byte address 0x4 - core index']
  #allocation1 [shape = 'u32[144,128]{1,0:T(1,128)}', space=vmem, size = 0x12000, scoped, tag = 'internal scratch']
  #allocation2 [shape = 'f32[256,4]{1,0:T(8,128)}', space=vmem, size = 0x20000, scoped, tag = 'scratch operand']
  %s0 = inlined_call_operand.vmem [shape: bf16[3,2,16,18,16], index: 0, kind: input, shape index: {}]
  %s1 = inlined_call_operand.vmem [shape: bf16[3,3,16,4], index: 1, kind: input, shape index: {}]
  %s2 = inlined_call_operand.vmem [shape: f32[1,4], index: 2, kind: input, shape index: {}]
  %s3 = inlined_call_operand.vmem [shape: f32[1,4], index: 3, kind: input, shape index: {}]
  %s4 = inlined_call_operand.vmem [shape: bf16[512,4], index: 4, kind: output, shape index: {}]
  %s5 = sld [smem:[#allocation0]]
  $region57: #{tpu_custom_call.1} parent=0
    _
  %s7 = ssub.s32 1, %s5
  %s8 = scalar_select 0, %s7, %s5
  loop: start=0, step=1, limit=8
  $region2: #{tpu_custom_call.1} parent=0 // loop_pre_header
    _
  $region3: #{tpu_custom_call.1} parent=0 // loop_header
    %s10 = sphi 0, %s14
    %p11 = scmp.ge.s32.totalorder %s10, 8
    %s17 = sphi 0, %s36
    %s18 = sphi 0, %s32
    %s19 = sphi 0, %s28
    %s20 = sphi 0, %s17
    %s21 = sphi 0, %s18
    %s22 = sphi 0, %s19
    %s23 = sphi 0, %s20
    %s24 = sphi 0, %s21
    %s25 = sphi 0, %s22
    %s43 = sphi 0, %s45
    %s46 = sphi 0, %s43
    %s47 = sphi 0, %s46
    %s63 = sphi 0, %s47
    %s69 = sphi 0, %s71
    %s72 = sphi 0, %s69
    %s73 = sphi 0, %s72
    %s89 = sphi 0, %s73
    %s93 = sphi 0, %s93
    %s95 = sphi 0, %s93
    %s96 = sphi 0, %s95
    %s110 = sphi 0, %s96
    %s114 = sphi 0, %s114
    %s116 = sphi 0, %s114
    %s117 = sphi 0, %s116
    %s131 = sphi 0, %s117
    %s139 = sphi 0, %s141
    %s142 = sphi 0, %s139
    %s143 = sphi 0, %s142
    %s159 = sphi 0, %s143
  $region4: #{tpu_custom_call.1} parent=0 // loop_header_branch
    %13 = sbr.rel (%p11) target = $region8
  $region5: #{tpu_custom_call.1} parent=0 // loop_body
    %s15 = ssub.s32 %s10, 1
    %s16 = ssub.s32 %s10, 2
    %s26 = sadd.s32 1, %s19
    %p27 = scmp.ge.s32.totalorder %s26, 3
    %s28 = scalar_select %p27, 0, %s26
    %s29 = sadd.s32 1, %s18
    %s30 = scalar_select %p27, %s29, %s18
    %p31 = scmp.ge.s32.totalorder %s30, 1
    %s32 = scalar_select %p31, 0, %s30
    %s33 = sadd.s32 1, %s17
    %s34 = scalar_select %p31, %s33, %s17
    %p35 = scmp.ge.s32.totalorder %s34, 2
    %s36 = scalar_select %p35, 0, %s34
    %s37 = ssub.s32 %s19, %s28
    %s38 = ssub.s32 %s17, %s36
    %s39 = sor.u32 %s37, %s38
    %s40 = ssub.s32 %s18, %s32
    %s41 = sor.u32 %s39, %s40
    %p42 = scmp.eq.s32.totalorder %s41, 0
    %s44 = sadd.s32 %s43, 1
    %s45 = scalar_select %p42, %s43, %s44
    %p48 = pneg %p42
    %p49 = scmp.eq.s32.totalorder %s10, 5
    %p50 = por %p48, %p49
    %p51 = scmp.ne.s32.totalorder %s43, %s46
    %p52 = scmp.eq.s32.totalorder %s10, 0
    %p53 = por %p51, %p52
    %p54 = scmp.ne.s32.totalorder %s43, %s46
    %p55 = scmp.eq.s32.totalorder %s15, 5
    %p56 = por %p54, %p55
    %p57 = scmp.ne.s32.totalorder %s46, %s47
    %p58 = scmp.eq.s32.totalorder %s15, 0
    %p59 = por %p57, %p58
    %p60 = scmp.ne.s32.totalorder %s46, %s47
    %p61 = scmp.eq.s32.totalorder %s16, 5
    %p62 = por %p60, %p61
    %p64 = scmp.ne.s32.totalorder %s47, %s63
    %p65 = scmp.eq.s32.totalorder %s16, 0
    %p66 = por %p64, %p65
    %s67 = ssub.s32 %s19, %s28
    %p68 = scmp.eq.s32.totalorder %s67, 0
    %s70 = sadd.s32 %s69, 1
    %s71 = scalar_select %p68, %s69, %s70
    %p74 = pneg %p68
    %p75 = scmp.eq.s32.totalorder %s10, 5
    %p76 = por %p74, %p75
    %p77 = scmp.ne.s32.totalorder %s69, %s72
    %p78 = scmp.eq.s32.totalorder %s10, 0
    %p79 = por %p77, %p78
    %p80 = scmp.ne.s32.totalorder %s69, %s72
    %p81 = scmp.eq.s32.totalorder %s15, 5
    %p82 = por %p80, %p81
    %p83 = scmp.ne.s32.totalorder %s72, %s73
    %p84 = scmp.eq.s32.totalorder %s15, 0
    %p85 = por %p83, %p84
    %p86 = scmp.ne.s32.totalorder %s72, %s73
    %p87 = scmp.eq.s32.totalorder %s16, 5
    %p88 = por %p86, %p87
    %p90 = scmp.ne.s32.totalorder %s73, %s89
    %p91 = scmp.eq.s32.totalorder %s16, 0
    %p92 = por %p90, %p91
    %s94 = sadd.s32 %s93, 1
    %p97 = scmp.eq.s32.totalorder %s10, 5
    %p98 = scmp.ne.s32.totalorder %s93, %s95
    %p99 = scmp.eq.s32.totalorder %s10, 0
    %p100 = por %p98, %p99
    %p101 = scmp.ne.s32.totalorder %s93, %s95
    %p102 = scmp.eq.s32.totalorder %s15, 5
    %p103 = por %p101, %p102
    %p104 = scmp.ne.s32.totalorder %s95, %s96
    %p105 = scmp.eq.s32.totalorder %s15, 0
    %p106 = por %p104, %p105
    %p107 = scmp.ne.s32.totalorder %s95, %s96
    %p108 = scmp.eq.s32.totalorder %s16, 5
    %p109 = por %p107, %p108
    %p111 = scmp.ne.s32.totalorder %s96, %s110
    %p112 = scmp.eq.s32.totalorder %s16, 0
    %p113 = por %p111, %p112
    %s115 = sadd.s32 %s114, 1
    %p118 = scmp.eq.s32.totalorder %s10, 5
    %p119 = scmp.ne.s32.totalorder %s114, %s116
    %p120 = scmp.eq.s32.totalorder %s10, 0
    %p121 = por %p119, %p120
    %p122 = scmp.ne.s32.totalorder %s114, %s116
    %p123 = scmp.eq.s32.totalorder %s15, 5
    %p124 = por %p122, %p123
    %p125 = scmp.ne.s32.totalorder %s116, %s117
    %p126 = scmp.eq.s32.totalorder %s15, 0
    %p127 = por %p125, %p126
    %p128 = scmp.ne.s32.totalorder %s116, %s117
    %p129 = scmp.eq.s32.totalorder %s16, 5
    %p130 = por %p128, %p129
    %p132 = scmp.ne.s32.totalorder %s117, %s131
    %p133 = scmp.eq.s32.totalorder %s16, 0
    %p134 = por %p132, %p133
    %s135 = sadd.s32 %s17, %s18
    %s136 = sadd.s32 %s36, %s32
    %s137 = ssub.s32 %s135, %s136
    %p138 = scmp.eq.s32.totalorder %s137, 0
    %s140 = sadd.s32 %s139, 1
    %s141 = scalar_select %p138, %s139, %s140
    %p144 = pneg %p138
    %p145 = scmp.eq.s32.totalorder %s10, 5
    %p146 = por %p144, %p145
    %p147 = scmp.ne.s32.totalorder %s139, %s142
    %p148 = scmp.eq.s32.totalorder %s10, 0
    %p149 = por %p147, %p148
    %p150 = scmp.ne.s32.totalorder %s139, %s142
    %p151 = scmp.eq.s32.totalorder %s15, 5
    %p152 = por %p150, %p151
    %p153 = scmp.ne.s32.totalorder %s142, %s143
    %p154 = scmp.eq.s32.totalorder %s15, 0
    %p155 = por %p153, %p154
    %p156 = scmp.ne.s32.totalorder %s142, %s143
    %p157 = scmp.eq.s32.totalorder %s16, 5
    %p158 = por %p156, %p157
    %p160 = scmp.ne.s32.totalorder %s143, %s159
    %p161 = scmp.eq.s32.totalorder %s16, 0
    %p162 = por %p160, %p161
    %p163 = scmp.le.s32.totalorder 1, %s10
    %p164 = scmp.lt.s32.totalorder %s10, 7
    %p165 = pnand %p163, %p164
    %p166 = pneg %p165
    // Predicated region
    $region9: #{tpu_custom_call.1} parent=5 // pred_check
      _
    $region10: #{tpu_custom_call.1} parent=5 // pred_check_branch
      %168 = sbr.rel (%p165) target = $region12
    $region11: #{tpu_custom_call.1} parent=5 // pred_region
      %s169 = ssub.s32 %s10, 1
      // Predicated region
      $region13: #{tpu_custom_call.1} parent=11 // pred_check
        %p170 = pneg %p106
      $region14: #{tpu_custom_call.1} parent=11 // pred_check_branch
        %172 = sbr.rel (%p170) target = $region16
      $region15: #{tpu_custom_call.1} parent=11 // pred_region
        _
      $region16: #{tpu_custom_call.1} parent=11 // pred_fallthru
        _
      // Predicated region
      $region17: #{tpu_custom_call.1} parent=11 // pred_check
        %p173 = pneg %p127
      $region18: #{tpu_custom_call.1} parent=11 // pred_check_branch
        %175 = sbr.rel (%p173) target = $region20
      $region19: #{tpu_custom_call.1} parent=11 // pred_region
        _
      $region20: #{tpu_custom_call.1} parent=11 // pred_fallthru
        _
    $region12: #{tpu_custom_call.1} parent=5 // pred_fallthru
      _
    %p176 = scmp.lt.s32.totalorder %s10, 6
    // Predicated region
    $region21: #{tpu_custom_call.1} parent=5 // pred_check
      %p177 = pneg %p176
    $region22: #{tpu_custom_call.1} parent=5 // pred_check_branch
      %179 = sbr.rel (%p177) target = $region24
    $region23: #{tpu_custom_call.1} parent=5 // pred_region
      // Predicated region
      $region25: #{tpu_custom_call.1} parent=23 // pred_check
        %p180 = pneg %p53
      $region26: #{tpu_custom_call.1} parent=23 // pred_check_branch
        %182 = sbr.rel (%p180) target = $region28
      $region27: #{tpu_custom_call.1} parent=23 // pred_region
        %s183 = smul.u32 16, %s18
        %p184 = scmp.lt.s32.totalorder %s19, 2
        %s185 = scalar_select %p184, %s19, 2
        %p186 = scmp.lt.s32.totalorder %s17, 1
        %s187 = scalar_select %p186, %s17, 1
        %p188 = scmp.lt.s32.totalorder %s183, 15
        %s189 = scalar_select %p188, %s183, 15
        %s190 = smul.addr %s189, 3
        %s191 = smul.addr %s187, 48
        %s192 = sadd.s32 %s190, %s191
        %s193 = smul.addr %s185, 96
        %s194 = sadd.s32 %s192, %s193
        %s195 = smul.addr %s194, 4
        %s196 = scalar_lea.vmem %s0, %s195
        %s197 = smul.u32 16, %s18
      $region28: #{tpu_custom_call.1} parent=23 // pred_fallthru
        _
      // Predicated region
      $region29: #{tpu_custom_call.1} parent=23 // pred_check
        %p198 = pneg %p79
      $region30: #{tpu_custom_call.1} parent=23 // pred_check_branch
        %200 = sbr.rel (%p198) target = $region32
      $region31: #{tpu_custom_call.1} parent=23 // pred_region
        %p201 = scmp.lt.s32.totalorder %s19, 2
        %s202 = scalar_select %p201, %s19, 2
        %s203 = smul.addr %s202, 6
        %s204 = smul.addr %s203, 4
        %s205 = scalar_lea.vmem %s1, %s204
      $region32: #{tpu_custom_call.1} parent=23 // pred_fallthru
        _
    $region24: #{tpu_custom_call.1} parent=5 // pred_fallthru
      _
    %p206 = scmp.le.s32.totalorder 1, %s10
    %p207 = scmp.lt.s32.totalorder %s10, 7
    %p208 = pnand %p206, %p207
    %p209 = pneg %p208
    // Predicated region
    $region33: #{tpu_custom_call.1} parent=5 // pred_check
      _
    $region34: #{tpu_custom_call.1} parent=5 // pred_check_branch
      %211 = sbr.rel (%p208) target = $region36
    $region35: #{tpu_custom_call.1} parent=5 // pred_region
      %s212 = ssub.s32 %s10, 1
      %s213 = smul.u32 16, %s21
      %p214 = scmp.lt.s32.totalorder %s22, 2
      %s215 = scalar_select %p214, %s22, 2
      %p216 = scmp.lt.s32.totalorder %s20, 1
      %s217 = scalar_select %p216, %s20, 1
      %p218 = scmp.lt.s32.totalorder %s213, 15
      %s219 = scalar_select %p218, %s213, 15
      %s220 = smul.addr %s219, 3
      %s221 = smul.addr %s217, 48
      %s222 = sadd.s32 %s220, %s221
      %s223 = smul.addr %s215, 96
      %s224 = sadd.s32 %s222, %s223
      %s225 = smul.addr %s224, 4
      %s226 = scalar_lea.vmem %s0, %s225
      %p227 = pneg %p59
      %p228 = pneg %p56
      %p229 = scmp.lt.s32.totalorder %s22, 2
      %s230 = scalar_select %p229, %s22, 2
      %s231 = smul.addr %s230, 6
      %s232 = smul.addr %s231, 4
      %s233 = scalar_lea.vmem %s1, %s232
      %p234 = pneg %p85
      %p235 = pneg %p82
      %p236 = pneg %p106
      %p237 = pneg %p103
      %p238 = pneg %p127
      %p239 = pneg %p124
      %p240 = pneg %p155
      %p241 = pneg %p152
      %s242 = sadd.s32 %s20, %s21
      %s243 = smul.u32 32, %s242
      %p244 = scmp.lt.s32.totalorder %s243, 63
      %s245 = scalar_select %p244, %s243, 63
      %s246 = smul.addr %s245, 4
      %s247 = scalar_lea.vmem %s4, %s246
      %s248 = smul.u32 16, %s21
      %p249 = scmp.lt.s32.totalorder %s22, 2
      %s250 = scalar_select %p249, %s22, 2
      %p251 = scmp.lt.s32.totalorder %s20, 1
      %s252 = scalar_select %p251, %s20, 1
      %p253 = scmp.lt.s32.totalorder %s248, 15
      %s254 = scalar_select %p253, %s248, 15
      %s255 = smul.addr %s254, 3
      %s256 = smul.addr %s252, 48
      %s257 = sadd.s32 %s255, %s256
      %s258 = smul.addr %s250, 96
      %s259 = sadd.s32 %s257, %s258
      %s260 = smul.addr %s259, 4
      %s261 = scalar_lea.vmem %s0, %s260
      %s262 = smul.u32 16, %s21
      %p263 = scmp.lt.s32.totalorder %s22, 2
      %s264 = scalar_select %p263, %s22, 2
      %s265 = smul.addr %s264, 6
      %s266 = smul.addr %s265, 4
      %s267 = scalar_lea.vmem %s1, %s266
      %s268 = sadd.s32 %s20, %s21
      %s269 = smul.u32 32, %s268
      %p270 = scmp.lt.s32.totalorder %s269, 63
      %s271 = scalar_select %p270, %s269, 63
      %s272 = smul.addr %s271, 4
      %s273 = scalar_lea.vmem %s4, %s272
      %s274 = sadd.s32 %s20, %s21
      %s275 = smul.u32 32, %s274
      %p277 = scmp.eq.s32.totalorder %s22, 0
      // Predicated region
      $region37: #{tpu_custom_call.1} parent=35 // pred_check
        %p278 = pneg %p277
      $region38: #{tpu_custom_call.1} parent=35 // pred_check_branch
        %280 = sbr.rel (%p278) target = $region40
      $region39: #{tpu_custom_call.1} parent=35 // pred_region
        %vm281 = vcmask 31744
        %282 = vst.msk [vmem:[#allocation2] sm:$0xff] %vm281, 0.0
        %283 = vst.msk [vmem:[#allocation2 + $0x8] sm:$0xff] %vm281, 0.0
        %284 = vst.msk [vmem:[#allocation2 + $0x10] sm:$0xff] %vm281, 0.0
        %285 = vst.msk [vmem:[#allocation2 + $0x18] sm:$0xff] %vm281, 0.0
        %286 = vst.msk [vmem:[#allocation2 + $0x20] sm:$0xff] %vm281, 0.0
        %287 = vst.msk [vmem:[#allocation2 + $0x28] sm:$0xff] %vm281, 0.0
        %288 = vst.msk [vmem:[#allocation2 + $0x30] sm:$0xff] %vm281, 0.0
        %289 = vst.msk [vmem:[#allocation2 + $0x38] sm:$0xff] %vm281, 0.0
        %290 = vst.msk [vmem:[#allocation2 + $0x40] sm:$0xff] %vm281, 0.0
        %291 = vst.msk [vmem:[#allocation2 + $0x48] sm:$0xff] %vm281, 0.0
        %292 = vst.msk [vmem:[#allocation2 + $0x50] sm:$0xff] %vm281, 0.0
        %293 = vst.msk [vmem:[#allocation2 + $0x58] sm:$0xff] %vm281, 0.0
        %294 = vst.msk [vmem:[#allocation2 + $0x60] sm:$0xff] %vm281, 0.0
        %295 = vst.msk [vmem:[#allocation2 + $0x68] sm:$0xff] %vm281, 0.0
        %296 = vst.msk [vmem:[#allocation2 + $0x70] sm:$0xff] %vm281, 0.0
        %297 = vst.msk [vmem:[#allocation2 + $0x78] sm:$0xff] %vm281, 0.0
        %298 = vst.msk [vmem:[#allocation2 + $0x80] sm:$0xff] %vm281, 0.0
        %299 = vst.msk [vmem:[#allocation2 + $0x88] sm:$0xff] %vm281, 0.0
        %300 = vst.msk [vmem:[#allocation2 + $0x90] sm:$0xff] %vm281, 0.0
        %301 = vst.msk [vmem:[#allocation2 + $0x98] sm:$0xff] %vm281, 0.0
        %302 = vst.msk [vmem:[#allocation2 + $0xa0] sm:$0xff] %vm281, 0.0
        %303 = vst.msk [vmem:[#allocation2 + $0xa8] sm:$0xff] %vm281, 0.0
        %304 = vst.msk [vmem:[#allocation2 + $0xb0] sm:$0xff] %vm281, 0.0
        %305 = vst.msk [vmem:[#allocation2 + $0xb8] sm:$0xff] %vm281, 0.0
        %306 = vst.msk [vmem:[#allocation2 + $0xc0] sm:$0xff] %vm281, 0.0
        %307 = vst.msk [vmem:[#allocation2 + $0xc8] sm:$0xff] %vm281, 0.0
        %308 = vst.msk [vmem:[#allocation2 + $0xd0] sm:$0xff] %vm281, 0.0
        %309 = vst.msk [vmem:[#allocation2 + $0xd8] sm:$0xff] %vm281, 0.0
        %310 = vst.msk [vmem:[#allocation2 + $0xe0] sm:$0xff] %vm281, 0.0
        %311 = vst.msk [vmem:[#allocation2 + $0xe8] sm:$0xff] %vm281, 0.0
        %312 = vst.msk [vmem:[#allocation2 + $0xf0] sm:$0xff] %vm281, 0.0
        %313 = vst.msk [vmem:[#allocation2 + $0xf8] sm:$0xff] %vm281, 0.0
      $region40: #{tpu_custom_call.1} parent=35 // pred_fallthru
        _
      %v314 = vld [vmem:[%s261] sm:$0xf]
      %v315 = vld [vmem:[%s261 + $0x4] sm:$0xf]
      %v316 = vld [vmem:[%s261 + $0x8] sm:$0x1]
      %v317 = vld [vmem:[%s261 + $0xc] sm:$0xf]
      %v318 = vld [vmem:[%s261 + $0x10] sm:$0xf]
      %v319 = vld [vmem:[%s261 + $0x14] sm:$0x1]
      %v320 = vld [vmem:[%s261 + $0x18] sm:$0xf]
      %v321 = vld [vmem:[%s261 + $0x1c] sm:$0xf]
      %v322 = vld [vmem:[%s261 + $0x20] sm:$0x1]
      %v323 = vld [vmem:[%s261 + $0x24] sm:$0xf]
      %v324 = vld [vmem:[%s261 + $0x28] sm:$0xf]
      %v325 = vld [vmem:[%s261 + $0x2c] sm:$0x1]
      %v326 = vld [vmem:[%s261 + $0x30] sm:$0xf]
      %v327 = vld [vmem:[%s261 + $0x34] sm:$0xf]
      %v328 = vld [vmem:[%s261 + $0x38] sm:$0x1]
      %v329 = vld [vmem:[%s261 + $0x3c] sm:$0xf]
      %v330 = vld [vmem:[%s261 + $0x40] sm:$0xf]
      %v331 = vld [vmem:[%s261 + $0x44] sm:$0x1]
      %v332 = vld [vmem:[%s261 + $0x48] sm:$0xf]
      %v333 = vld [vmem:[%s261 + $0x4c] sm:$0xf]
      %v334 = vld [vmem:[%s261 + $0x50] sm:$0x1]
      %v335 = vld [vmem:[%s261 + $0x54] sm:$0xf]
      %v336 = vld [vmem:[%s261 + $0x58] sm:$0xf]
      %v337 = vld [vmem:[%s261 + $0x5c] sm:$0x1]
      %v338 = vld [vmem:[%s261 + $0x60] sm:$0xf]
      %v339 = vld [vmem:[%s261 + $0x64] sm:$0xf]
      %v340 = vld [vmem:[%s261 + $0x68] sm:$0x1]
      %v341 = vld [vmem:[%s261 + $0x6c] sm:$0xf]
      %v342 = vld [vmem:[%s261 + $0x70] sm:$0xf]
      %v343 = vld [vmem:[%s261 + $0x74] sm:$0x1]
      %v344 = vld [vmem:[%s261 + $0x78] sm:$0xf]
      %v345 = vld [vmem:[%s261 + $0x7c] sm:$0xf]
      %v346 = vld [vmem:[%s261 + $0x80] sm:$0x1]
      %v347 = vld [vmem:[%s261 + $0x84] sm:$0xf]
      %v348 = vld [vmem:[%s261 + $0x88] sm:$0xf]
      %v349 = vld [vmem:[%s261 + $0x8c] sm:$0x1]
      %v350 = vld [vmem:[%s261 + $0x90] sm:$0xf]
      %v351 = vld [vmem:[%s261 + $0x94] sm:$0xf]
      %v352 = vld [vmem:[%s261 + $0x98] sm:$0x1]
      %v353 = vld [vmem:[%s261 + $0x9c] sm:$0xf]
      %v354 = vld [vmem:[%s261 + $0xa0] sm:$0xf]
      %v355 = vld [vmem:[%s261 + $0xa4] sm:$0x1]
      %v356 = vld [vmem:[%s261 + $0xa8] sm:$0xf]
      %v357 = vld [vmem:[%s261 + $0xac] sm:$0xf]
      %v358 = vld [vmem:[%s261 + $0xb0] sm:$0x1]
      %v359 = vld [vmem:[%s261 + $0xb4] sm:$0xf]
      %v360 = vld [vmem:[%s261 + $0xb8] sm:$0xf]
      %v361 = vld [vmem:[%s261 + $0xbc] sm:$0x1]
      %v362 = vld [vmem:[#allocation2] sm:$0xff]
      %v363 = vld [vmem:[#allocation2 + $0x8] sm:$0xff]
      %v364 = vld [vmem:[#allocation2 + $0x10] sm:$0xff]
      %v365 = vld [vmem:[#allocation2 + $0x18] sm:$0xff]
      %v366 = vld [vmem:[#allocation2 + $0x20] sm:$0xff]
      %v367 = vld [vmem:[#allocation2 + $0x28] sm:$0xff]
      %v368 = vld [vmem:[#allocation2 + $0x30] sm:$0xff]
      %v369 = vld [vmem:[#allocation2 + $0x38] sm:$0xff]
      %v370 = vld [vmem:[#allocation2 + $0x40] sm:$0xff]
      %v371 = vld [vmem:[#allocation2 + $0x48] sm:$0xff]
      %v372 = vld [vmem:[#allocation2 + $0x50] sm:$0xff]
      %v373 = vld [vmem:[#allocation2 + $0x58] sm:$0xff]
      %v374 = vld [vmem:[#allocation2 + $0x60] sm:$0xff]
      %v375 = vld [vmem:[#allocation2 + $0x68] sm:$0xff]
      %v376 = vld [vmem:[#allocation2 + $0x70] sm:$0xff]
      %v377 = vld [vmem:[#allocation2 + $0x78] sm:$0xff]
      %v378 = vld [vmem:[#allocation2 + $0x80] sm:$0xff]
      %v379 = vld [vmem:[#allocation2 + $0x88] sm:$0xff]
      %v380 = vld [vmem:[#allocation2 + $0x90] sm:$0xff]
      %v381 = vld [vmem:[#allocation2 + $0x98] sm:$0xff]
      %v382 = vld [vmem:[#allocation2 + $0xa0] sm:$0xff]
      %v383 = vld [vmem:[#allocation2 + $0xa8] sm:$0xff]
      %v384 = vld [vmem:[#allocation2 + $0xb0] sm:$0xff]
      %v385 = vld [vmem:[#allocation2 + $0xb8] sm:$0xff]
      %v386 = vld [vmem:[#allocation2 + $0xc0] sm:$0xff]
      %v387 = vld [vmem:[#allocation2 + $0xc8] sm:$0xff]
      %v388 = vld [vmem:[#allocation2 + $0xd0] sm:$0xff]
      %v389 = vld [vmem:[#allocation2 + $0xd8] sm:$0xff]
      %v390 = vld [vmem:[#allocation2 + $0xe0] sm:$0xff]
      %v391 = vld [vmem:[#allocation2 + $0xe8] sm:$0xff]
      %v392 = vld [vmem:[#allocation2 + $0xf0] sm:$0xff]
      %v393 = vld [vmem:[#allocation2 + $0xf8] sm:$0xff]
      %v394 = vld [vmem:[%s267] sm:$0xf]
      %v395 = vld [vmem:[%s267 + $0x4] sm:$0xf]
      %v428 = vunpack.c.l.b16 %v314
      %v429 = vunpack.c.l.b16 %v315
      %v430 = vunpack.c.l.b16 %v317
      %v431 = vunpack.c.l.b16 %v318
      %v432 = vunpack.c.l.b16 %v320
      %v433 = vunpack.c.l.b16 %v321
      %v434 = vunpack.c.l.b16 %v323
      %v435 = vunpack.c.l.b16 %v324
      %v436 = vunpack.c.l.b16 %v326
      %v437 = vunpack.c.l.b16 %v327
      %v438 = vunpack.c.l.b16 %v329
      %v439 = vunpack.c.l.b16 %v330
      %v440 = vunpack.c.l.b16 %v332
      %v441 = vunpack.c.l.b16 %v333
      %v442 = vunpack.c.l.b16 %v335
      %v443 = vunpack.c.l.b16 %v336
      %v444 = vunpack.c.l.b16 %v338
      %v445 = vunpack.c.l.b16 %v339
      %v446 = vunpack.c.l.b16 %v341
      %v447 = vunpack.c.l.b16 %v342
      %v448 = vunpack.c.l.b16 %v344
      %v449 = vunpack.c.l.b16 %v345
      %v450 = vunpack.c.l.b16 %v347
      %v451 = vunpack.c.l.b16 %v348
      %v452 = vunpack.c.l.b16 %v350
      %v453 = vunpack.c.l.b16 %v351
      %v454 = vunpack.c.l.b16 %v353
      %v455 = vunpack.c.l.b16 %v354
      %v456 = vunpack.c.l.b16 %v356
      %v457 = vunpack.c.l.b16 %v357
      %v458 = vunpack.c.l.b16 %v359
      %v459 = vunpack.c.l.b16 %v360
      %v460 = vpack.c.b16 %v429, %v428
      %v461 = vpack.c.b16 %v431, %v430
      %v462 = vpack.c.b16 %v433, %v432
      %v463 = vpack.c.b16 %v435, %v434
      %v464 = vpack.c.b16 %v437, %v436
      %v465 = vpack.c.b16 %v439, %v438
      %v466 = vpack.c.b16 %v441, %v440
      %v467 = vpack.c.b16 %v443, %v442
      %v468 = vpack.c.b16 %v445, %v444
      %v469 = vpack.c.b16 %v447, %v446
      %v470 = vpack.c.b16 %v449, %v448
      %v471 = vpack.c.b16 %v451, %v450
      %v472 = vpack.c.b16 %v453, %v452
      %v473 = vpack.c.b16 %v455, %v454
      %v474 = vpack.c.b16 %v457, %v456
      %v475 = vpack.c.b16 %v459, %v458
      %v478 = vunpack.c.l.b16 %v394
      %v479 = vunpack.c.l.b16 %v395
      %v480 = vpack.c.b16 %v479, %v478
      %vm482 = vcmask 130048
      %v484 = vsel %vm482, %v460, 0
      %v487 = vsel %vm482, %v461, 0
      %v490 = vsel %vm482, %v462, 0
      %v493 = vsel %vm482, %v463, 0
      %v496 = vsel %vm482, %v464, 0
      %v499 = vsel %vm482, %v465, 0
      %v502 = vsel %vm482, %v466, 0
      %v505 = vsel %vm482, %v467, 0
      %v508 = vsel %vm482, %v468, 0
      %v511 = vsel %vm482, %v469, 0
      %v514 = vsel %vm482, %v470, 0
      %v517 = vsel %vm482, %v471, 0
      %v520 = vsel %vm482, %v472, 0
      %v523 = vsel %vm482, %v473, 0
      %v526 = vsel %vm482, %v474, 0
      %v529 = vsel %vm482, %v475, 0
      %531 = vmatprep.subr.bf16.mxu0 0
      %532 = vmatpush1.bf16.msra.mxu0 %v480
      %533 = vmatprep.subr.bf16.mxu0 0
      %534 = vmatpush1.bf16.msra.mxu0 0
      %535 = vmatprep.subr.bf16.mxu0 0
      %536 = vmatpush1.bf16.msra.mxu0 0
      %537 = vmatprep.subr.bf16.mxu0 0
      %538 = vmatpush1.bf16.msra.mxu0 0
      %539 = vmatprep.subr.bf16.mxu0 0
      %540 = vmatpush1.bf16.msra.mxu0 0
      %541 = vmatprep.subr.bf16.mxu0 0
      %542 = vmatpush1.bf16.msra.mxu0 0
      %543 = vmatprep.subr.bf16.mxu0 0
      %544 = vmatpush1.bf16.msra.mxu0 0
      %545 = vmatprep.subr.bf16.mxu0 0
      %546 = vmatpush1.bf16.msra.mxu0 0
      %547 = vmatprep.subr.bf16.mxu0 0
      %548 = vmatpush1.bf16.msra.mxu0 0
      %549 = vmatprep.subr.bf16.mxu0 0
      %550 = vmatpush1.bf16.msra.mxu0 0
      %551 = vmatprep.subr.bf16.mxu0 0
      %552 = vmatpush1.bf16.msra.mxu0 0
      %553 = vmatprep.subr.bf16.mxu0 0
      %554 = vmatpush1.bf16.msra.mxu0 0
      %555 = vmatprep.subr.bf16.mxu0 0
      %556 = vmatpush1.bf16.msra.mxu0 0
      %557 = vmatprep.subr.bf16.mxu0 0
      %558 = vmatpush1.bf16.msra.mxu0 0
      %559 = vmatprep.subr.bf16.mxu0 0
      %560 = vmatpush1.bf16.msra.mxu0 0
      %561 = vmatprep.subr.bf16.mxu0 0
      %562 = vmatpush1.bf16.msra.mxu0 0
      %563 = vmatprep.mubr.bf16.mxu0 0
      %564 = vmatmul.mubr.bf16.gmra.mrb[0].mxu0 %v484
      %v565 = vpop.f32.mrb[0].mxu0
      %v566 = vadd.f32 0.0, %v565
      %v567 = vpop.f32.mrb[0].mxu0
      %v568 = vpop.f32.mrb[0].mxu0
      %v569 = vadd.f32 0.0, %v568
      %v570 = vpop.f32.mrb[0].mxu0
      %571 = vmatprep.mubr.bf16.mxu0 0
      %572 = vmatmul.mubr.bf16.gmra.mrb[0].mxu0 %v487
      %v573 = vpop.f32.mrb[0].mxu0
      %v574 = vadd.f32 0.0, %v573
      %v575 = vpop.f32.mrb[0].mxu0
      %v576 = vpop.f32.mrb[0].mxu0
      %v577 = vadd.f32 0.0, %v576
      %v578 = vpop.f32.mrb[0].mxu0
      %579 = vmatprep.mubr.bf16.mxu0 0
      %580 = vmatmul.mubr.bf16.gmra.mrb[0].mxu0 %v490
      %v581 = vpop.f32.mrb[0].mxu0
      %v582 = vadd.f32 0.0, %v581
      %v583 = vpop.f32.mrb[0].mxu0
      %v584 = vpop.f32.mrb[0].mxu0
      %v585 = vadd.f32 0.0, %v584
      %v586 = vpop.f32.mrb[0].mxu0
      %587 = vmatprep.mubr.bf16.mxu0 0
      %588 = vmatmul.mubr.bf16.gmra.mrb[0].mxu0 %v493
      %v589 = vpop.f32.mrb[0].mxu0
      %v590 = vadd.f32 0.0, %v589
      %v591 = vpop.f32.mrb[0].mxu0
      %v592 = vpop.f32.mrb[0].mxu0
      %v593 = vadd.f32 0.0, %v592
      %v594 = vpop.f32.mrb[0].mxu0
      %595 = vmatprep.mubr.bf16.mxu0 0
      %596 = vmatmul.mubr.bf16.gmra.mrb[0].mxu0 %v496
      %v597 = vpop.f32.mrb[0].mxu0
      %v598 = vadd.f32 0.0, %v597
      %v599 = vpop.f32.mrb[0].mxu0
      %v600 = vpop.f32.mrb[0].mxu0
      %v601 = vadd.f32 0.0, %v600
      %v602 = vpop.f32.mrb[0].mxu0
      %603 = vmatprep.mubr.bf16.mxu0 0
      %604 = vmatmul.mubr.bf16.gmra.mrb[0].mxu0 %v499
      %v605 = vpop.f32.mrb[0].mxu0
      %v606 = vadd.f32 0.0, %v605
      %v607 = vpop.f32.mrb[0].mxu0
      %v608 = vpop.f32.mrb[0].mxu0
      %v609 = vadd.f32 0.0, %v608
      %v610 = vpop.f32.mrb[0].mxu0
      %611 = vmatprep.mubr.bf16.mxu0 0
      %612 = vmatmul.mubr.bf16.gmra.mrb[0].mxu0 %v502
      %v613 = vpop.f32.mrb[0].mxu0
      %v614 = vadd.f32 0.0, %v613
      %v615 = vpop.f32.mrb[0].mxu0
      %v616 = vpop.f32.mrb[0].mxu0
      %v617 = vadd.f32 0.0, %v616
      %v618 = vpop.f32.mrb[0].mxu0
      %619 = vmatprep.mubr.bf16.mxu0 0
      %620 = vmatmul.mubr.bf16.gmra.mrb[0].mxu0 %v505
      %v621 = vpop.f32.mrb[0].mxu0
      %v622 = vadd.f32 0.0, %v621
      %v623 = vpop.f32.mrb[0].mxu0
      %v624 = vpop.f32.mrb[0].mxu0
      %v625 = vadd.f32 0.0, %v624
      %v626 = vpop.f32.mrb[0].mxu0
      %627 = vmatprep.mubr.bf16.mxu0 0
      %628 = vmatmul.mubr.bf16.gmra.mrb[0].mxu0 %v508
      %v629 = vpop.f32.mrb[0].mxu0
      %v630 = vadd.f32 0.0, %v629
      %v631 = vpop.f32.mrb[0].mxu0
      %v632 = vpop.f32.mrb[0].mxu0
      %v633 = vadd.f32 0.0, %v632
      %v634 = vpop.f32.mrb[0].mxu0
      %635 = vmatprep.mubr.bf16.mxu0 0
      %636 = vmatmul.mubr.bf16.gmra.mrb[0].mxu0 %v511
      %v637 = vpop.f32.mrb[0].mxu0
      %v638 = vadd.f32 0.0, %v637
      %v639 = vpop.f32.mrb[0].mxu0
      %v640 = vpop.f32.mrb[0].mxu0
      %v641 = vadd.f32 0.0, %v640
      %v642 = vpop.f32.mrb[0].mxu0
      %643 = vmatprep.mubr.bf16.mxu0 0
      %644 = vmatmul.mubr.bf16.gmra.mrb[0].mxu0 %v514
      %v645 = vpop.f32.mrb[0].mxu0
      %v646 = vadd.f32 0.0, %v645
      %v647 = vpop.f32.mrb[0].mxu0
      %v648 = vpop.f32.mrb[0].mxu0
      %v649 = vadd.f32 0.0, %v648
      %v650 = vpop.f32.mrb[0].mxu0
      %651 = vmatprep.mubr.bf16.mxu0 0
      %652 = vmatmul.mubr.bf16.gmra.mrb[0].mxu0 %v517
      %v653 = vpop.f32.mrb[0].mxu0
      %v654 = vadd.f32 0.0, %v653
      %v655 = vpop.f32.mrb[0].mxu0
      %v656 = vpop.f32.mrb[0].mxu0
      %v657 = vadd.f32 0.0, %v656
      %v658 = vpop.f32.mrb[0].mxu0
      %659 = vmatprep.mubr.bf16.mxu0 0
      %660 = vmatmul.mubr.bf16.gmra.mrb[0].mxu0 %v520
      %v661 = vpop.f32.mrb[0].mxu0
      %v662 = vadd.f32 0.0, %v661
      %v663 = vpop.f32.mrb[0].mxu0
      %v664 = vpop.f32.mrb[0].mxu0
      %v665 = vadd.f32 0.0, %v664
      %v666 = vpop.f32.mrb[0].mxu0
      %667 = vmatprep.mubr.bf16.mxu0 0
      %668 = vmatmul.mubr.bf16.gmra.mrb[0].mxu0 %v523
      %v669 = vpop.f32.mrb[0].mxu0
      %v670 = vadd.f32 0.0, %v669
      %v671 = vpop.f32.mrb[0].mxu0
      %v672 = vpop.f32.mrb[0].mxu0
      %v673 = vadd.f32 0.0, %v672
      %v674 = vpop.f32.mrb[0].mxu0
      %675 = vmatprep.mubr.bf16.mxu0 0
      %676 = vmatmul.mubr.bf16.gmra.mrb[0].mxu0 %v526
      %v677 = vpop.f32.mrb[0].mxu0
      %v678 = vadd.f32 0.0, %v677
      %v679 = vpop.f32.mrb[0].mxu0
      %v680 = vpop.f32.mrb[0].mxu0
      %v681 = vadd.f32 0.0, %v680
      %v682 = vpop.f32.mrb[0].mxu0
      %683 = vmatprep.mubr.bf16.mxu0 0
      %684 = vmatmul.mubr.bf16.gmra.mrb[0].mxu0 %v529
      %v685 = vpop.f32.mrb[0].mxu0
      %v686 = vadd.f32 0.0, %v685
      %v687 = vpop.f32.mrb[0].mxu0
      %v688 = vpop.f32.mrb[0].mxu0
      %v689 = vadd.f32 0.0, %v688
      %v690 = vpop.f32.mrb[0].mxu0
      %691 = vdwg.mxu0
      %v692 = vadd.f32 %v362, %v566
      %v693 = vadd.f32 %v363, %v569
      %v694 = vadd.f32 %v364, %v574
      %v695 = vadd.f32 %v365, %v577
      %v696 = vadd.f32 %v366, %v582
      %v697 = vadd.f32 %v367, %v585
      %v698 = vadd.f32 %v368, %v590
      %v699 = vadd.f32 %v369, %v593
      %v700 = vadd.f32 %v370, %v598
      %v701 = vadd.f32 %v371, %v601
      %v702 = vadd.f32 %v372, %v606
      %v703 = vadd.f32 %v373, %v609
      %v704 = vadd.f32 %v374, %v614
      %v705 = vadd.f32 %v375, %v617
      %v706 = vadd.f32 %v376, %v622
      %v707 = vadd.f32 %v377, %v625
      %v708 = vadd.f32 %v378, %v630
      %v709 = vadd.f32 %v379, %v633
      %v710 = vadd.f32 %v380, %v638
      %v711 = vadd.f32 %v381, %v641
      %v712 = vadd.f32 %v382, %v646
      %v713 = vadd.f32 %v383, %v649
      %v714 = vadd.f32 %v384, %v654
      %v715 = vadd.f32 %v385, %v657
      %v716 = vadd.f32 %v386, %v662
      %v717 = vadd.f32 %v387, %v665
      %v718 = vadd.f32 %v388, %v670
      %v719 = vadd.f32 %v389, %v673
      %v720 = vadd.f32 %v390, %v678
      %v721 = vadd.f32 %v391, %v681
      %v722 = vadd.f32 %v392, %v686
      %v723 = vadd.f32 %v393, %v689
      %vm724 = vsmask.f32 3328
      %vm725 = vsmask.f32 7440
      %vm726 = vmor %vm724, %vm725
      %v728 = vshrl.u32 %v314, 16
      %v730 = vrot.slane %v728, 4
      %v731 = vshll.u32 %v314, 16
      %v733 = vrot.slane %v731, 5
      %v734 = vor.u32 %v730, %v733
      %v735 = vrot.slane %v734, 4
      %v737 = vshll.u32 %v315, 16
      %v739 = vrot.slane %v737, 5
      %v740 = vsel %vm726, %v735, %v739
      %v741 = vshrl.u32 %v315, 16
      %v743 = vrot.slane %v741, 4
      %v744 = vor.u32 %v743, %v739
      %v745 = vrot.slane %v744, 4
      %v747 = vshll.u32 %v316, 16
      %v749 = vrot.slane %v747, 5
      %v750 = vsel %vm726, %v745, %v749
      %v752 = vshrl.u32 %v317, 16
      %v754 = vrot.slane %v752, 4
      %v755 = vshll.u32 %v317, 16
      %v757 = vrot.slane %v755, 5
      %v758 = vor.u32 %v754, %v757
      %v759 = vrot.slane %v758, 4
      %v761 = vshll.u32 %v318, 16
      %v763 = vrot.slane %v761, 5
      %v764 = vsel %vm726, %v759, %v763
      %v765 = vshrl.u32 %v318, 16
      %v767 = vrot.slane %v765, 4
      %v768 = vor.u32 %v767, %v763
      %v769 = vrot.slane %v768, 4
      %v771 = vshll.u32 %v319, 16
      %v773 = vrot.slane %v771, 5
      %v774 = vsel %vm726, %v769, %v773
      %v776 = vshrl.u32 %v320, 16
      %v778 = vrot.slane %v776, 4
      %v779 = vshll.u32 %v320, 16
      %v781 = vrot.slane %v779, 5
      %v782 = vor.u32 %v778, %v781
      %v783 = vrot.slane %v782, 4
      %v785 = vshll.u32 %v321, 16
      %v787 = vrot.slane %v785, 5
      %v788 = vsel %vm726, %v783, %v787
      %v789 = vshrl.u32 %v321, 16
      %v791 = vrot.slane %v789, 4
      %v792 = vor.u32 %v791, %v787
      %v793 = vrot.slane %v792, 4
      %v795 = vshll.u32 %v322, 16
      %v797 = vrot.slane %v795, 5
      %v798 = vsel %vm726, %v793, %v797
      %v800 = vshrl.u32 %v323, 16
      %v802 = vrot.slane %v800, 4
      %v803 = vshll.u32 %v323, 16
      %v805 = vrot.slane %v803, 5
      %v806 = vor.u32 %v802, %v805
      %v807 = vrot.slane %v806, 4
      %v809 = vshll.u32 %v324, 16
      %v811 = vrot.slane %v809, 5
      %v812 = vsel %vm726, %v807, %v811
      %v813 = vshrl.u32 %v324, 16
      %v815 = vrot.slane %v813, 4
      %v816 = vor.u32 %v815, %v811
      %v817 = vrot.slane %v816, 4
      %v819 = vshll.u32 %v325, 16
      %v821 = vrot.slane %v819, 5
      %v822 = vsel %vm726, %v817, %v821
      %v824 = vshrl.u32 %v326, 16
      %v826 = vrot.slane %v824, 4
      %v827 = vshll.u32 %v326, 16
      %v829 = vrot.slane %v827, 5
      %v830 = vor.u32 %v826, %v829
      %v831 = vrot.slane %v830, 4
      %v833 = vshll.u32 %v327, 16
      %v835 = vrot.slane %v833, 5
      %v836 = vsel %vm726, %v831, %v835
      %v837 = vshrl.u32 %v327, 16
      %v839 = vrot.slane %v837, 4
      %v840 = vor.u32 %v839, %v835
      %v841 = vrot.slane %v840, 4
      %v843 = vshll.u32 %v328, 16
      %v845 = vrot.slane %v843, 5
      %v846 = vsel %vm726, %v841, %v845
      %v848 = vshrl.u32 %v329, 16
      %v850 = vrot.slane %v848, 4
      %v851 = vshll.u32 %v329, 16
      %v853 = vrot.slane %v851, 5
      %v854 = vor.u32 %v850, %v853
      %v855 = vrot.slane %v854, 4
      %v857 = vshll.u32 %v330, 16
      %v859 = vrot.slane %v857, 5
      %v860 = vsel %vm726, %v855, %v859
      %v861 = vshrl.u32 %v330, 16
      %v863 = vrot.slane %v861, 4
      %v864 = vor.u32 %v863, %v859
      %v865 = vrot.slane %v864, 4
      %v867 = vshll.u32 %v331, 16
      %v869 = vrot.slane %v867, 5
      %v870 = vsel %vm726, %v865, %v869
      %v872 = vshrl.u32 %v332, 16
      %v874 = vrot.slane %v872, 4
      %v875 = vshll.u32 %v332, 16
      %v877 = vrot.slane %v875, 5
      %v878 = vor.u32 %v874, %v877
      %v879 = vrot.slane %v878, 4
      %v881 = vshll.u32 %v333, 16
      %v883 = vrot.slane %v881, 5
      %v884 = vsel %vm726, %v879, %v883
      %v885 = vshrl.u32 %v333, 16
      %v887 = vrot.slane %v885, 4
      %v888 = vor.u32 %v887, %v883
      %v889 = vrot.slane %v888, 4
      %v891 = vshll.u32 %v334, 16
      %v893 = vrot.slane %v891, 5
      %v894 = vsel %vm726, %v889, %v893
      %v896 = vshrl.u32 %v335, 16
      %v898 = vrot.slane %v896, 4
      %v899 = vshll.u32 %v335, 16
      %v901 = vrot.slane %v899, 5
      %v902 = vor.u32 %v898, %v901
      %v903 = vrot.slane %v902, 4
      %v905 = vshll.u32 %v336, 16
      %v907 = vrot.slane %v905, 5
      %v908 = vsel %vm726, %v903, %v907
      %v909 = vshrl.u32 %v336, 16
      %v911 = vrot.slane %v909, 4
      %v912 = vor.u32 %v911, %v907
      %v913 = vrot.slane %v912, 4
      %v915 = vshll.u32 %v337, 16
      %v917 = vrot.slane %v915, 5
      %v918 = vsel %vm726, %v913, %v917
      %v920 = vshrl.u32 %v338, 16
      %v922 = vrot.slane %v920, 4
      %v923 = vshll.u32 %v338, 16
      %v925 = vrot.slane %v923, 5
      %v926 = vor.u32 %v922, %v925
      %v927 = vrot.slane %v926, 4
      %v929 = vshll.u32 %v339, 16
      %v931 = vrot.slane %v929, 5
      %v932 = vsel %vm726, %v927, %v931
      %v933 = vshrl.u32 %v339, 16
      %v935 = vrot.slane %v933, 4
      %v936 = vor.u32 %v935, %v931
      %v937 = vrot.slane %v936, 4
      %v939 = vshll.u32 %v340, 16
      %v941 = vrot.slane %v939, 5
      %v942 = vsel %vm726, %v937, %v941
      %v944 = vshrl.u32 %v341, 16
      %v946 = vrot.slane %v944, 4
      %v947 = vshll.u32 %v341, 16
      %v949 = vrot.slane %v947, 5
      %v950 = vor.u32 %v946, %v949
      %v951 = vrot.slane %v950, 4
      %v953 = vshll.u32 %v342, 16
      %v955 = vrot.slane %v953, 5
      %v956 = vsel %vm726, %v951, %v955
      %v957 = vshrl.u32 %v342, 16
      %v959 = vrot.slane %v957, 4
      %v960 = vor.u32 %v959, %v955
      %v961 = vrot.slane %v960, 4
      %v963 = vshll.u32 %v343, 16
      %v965 = vrot.slane %v963, 5
      %v966 = vsel %vm726, %v961, %v965
      %v968 = vshrl.u32 %v344, 16
      %v970 = vrot.slane %v968, 4
      %v971 = vshll.u32 %v344, 16
      %v973 = vrot.slane %v971, 5
      %v974 = vor.u32 %v970, %v973
      %v975 = vrot.slane %v974, 4
      %v977 = vshll.u32 %v345, 16
      %v979 = vrot.slane %v977, 5
      %v980 = vsel %vm726, %v975, %v979
      %v981 = vshrl.u32 %v345, 16
      %v983 = vrot.slane %v981, 4
      %v984 = vor.u32 %v983, %v979
      %v985 = vrot.slane %v984, 4
      %v987 = vshll.u32 %v346, 16
      %v989 = vrot.slane %v987, 5
      %v990 = vsel %vm726, %v985, %v989
      %v992 = vshrl.u32 %v347, 16
      %v994 = vrot.slane %v992, 4
      %v995 = vshll.u32 %v347, 16
      %v997 = vrot.slane %v995, 5
      %v998 = vor.u32 %v994, %v997
      %v999 = vrot.slane %v998, 4
      %v1001 = vshll.u32 %v348, 16
      %v1003 = vrot.slane %v1001, 5
      %v1004 = vsel %vm726, %v999, %v1003
      %v1005 = vshrl.u32 %v348, 16
      %v1007 = vrot.slane %v1005, 4
      %v1008 = vor.u32 %v1007, %v1003
      %v1009 = vrot.slane %v1008, 4
      %v1011 = vshll.u32 %v349, 16
      %v1013 = vrot.slane %v1011, 5
      %v1014 = vsel %vm726, %v1009, %v1013
      %v1016 = vshrl.u32 %v350, 16
      %v1018 = vrot.slane %v1016, 4
      %v1019 = vshll.u32 %v350, 16
      %v1021 = vrot.slane %v1019, 5
      %v1022 = vor.u32 %v1018, %v1021
      %v1023 = vrot.slane %v1022, 4
      %v1025 = vshll.u32 %v351, 16
      %v1027 = vrot.slane %v1025, 5
      %v1028 = vsel %vm726, %v1023, %v1027
      %v1029 = vshrl.u32 %v351, 16
      %v1031 = vrot.slane %v1029, 4
      %v1032 = vor.u32 %v1031, %v1027
      %v1033 = vrot.slane %v1032, 4
      %v1035 = vshll.u32 %v352, 16
      %v1037 = vrot.slane %v1035, 5
      %v1038 = vsel %vm726, %v1033, %v1037
      %v1040 = vshrl.u32 %v353, 16
      %v1042 = vrot.slane %v1040, 4
      %v1043 = vshll.u32 %v353, 16
      %v1045 = vrot.slane %v1043, 5
      %v1046 = vor.u32 %v1042, %v1045
      %v1047 = vrot.slane %v1046, 4
      %v1049 = vshll.u32 %v354, 16
      %v1051 = vrot.slane %v1049, 5
      %v1052 = vsel %vm726, %v1047, %v1051
      %v1053 = vshrl.u32 %v354, 16
      %v1055 = vrot.slane %v1053, 4
      %v1056 = vor.u32 %v1055, %v1051
      %v1057 = vrot.slane %v1056, 4
      %v1059 = vshll.u32 %v355, 16
      %v1061 = vrot.slane %v1059, 5
      %v1062 = vsel %vm726, %v1057, %v1061
      %v1064 = vshrl.u32 %v356, 16
      %v1066 = vrot.slane %v1064, 4
      %v1067 = vshll.u32 %v356, 16
      %v1069 = vrot.slane %v1067, 5
      %v1070 = vor.u32 %v1066, %v1069
      %v1071 = vrot.slane %v1070, 4
      %v1073 = vshll.u32 %v357, 16
      %v1075 = vrot.slane %v1073, 5
      %v1076 = vsel %vm726, %v1071, %v1075
      %v1077 = vshrl.u32 %v357, 16
      %v1079 = vrot.slane %v1077, 4
      %v1080 = vor.u32 %v1079, %v1075
      %v1081 = vrot.slane %v1080, 4
      %v1083 = vshll.u32 %v358, 16
      %v1085 = vrot.slane %v1083, 5
      %v1086 = vsel %vm726, %v1081, %v1085
      %v1088 = vshrl.u32 %v359, 16
      %v1090 = vrot.slane %v1088, 4
      %v1091 = vshll.u32 %v359, 16
      %v1093 = vrot.slane %v1091, 5
      %v1094 = vor.u32 %v1090, %v1093
      %v1095 = vrot.slane %v1094, 4
      %v1097 = vshll.u32 %v360, 16
      %v1099 = vrot.slane %v1097, 5
      %v1100 = vsel %vm726, %v1095, %v1099
      %v1101 = vshrl.u32 %v360, 16
      %v1103 = vrot.slane %v1101, 4
      %v1104 = vor.u32 %v1103, %v1099
      %v1105 = vrot.slane %v1104, 4
      %v1107 = vshll.u32 %v361, 16
      %v1109 = vrot.slane %v1107, 5
      %v1110 = vsel %vm726, %v1105, %v1109
      %s1111 = scalar_lea.vmem %s267, 8
      %v1112 = vld [vmem:[%s1111] sm:$0xf]
      %v1113 = vld [vmem:[%s1111 + $0x4] sm:$0xf]
      %v1114 = vunpack.c.l.b16 %v740
      %v1115 = vunpack.c.l.b16 %v750
      %v1116 = vunpack.c.l.b16 %v764
      %v1117 = vunpack.c.l.b16 %v774
      %v1118 = vunpack.c.l.b16 %v788
      %v1119 = vunpack.c.l.b16 %v798
      %v1120 = vunpack.c.l.b16 %v812
      %v1121 = vunpack.c.l.b16 %v822
      %v1122 = vunpack.c.l.b16 %v836
      %v1123 = vunpack.c.l.b16 %v846
      %v1124 = vunpack.c.l.b16 %v860
      %v1125 = vunpack.c.l.b16 %v870
      %v1126 = vunpack.c.l.b16 %v884
      %v1127 = vunpack.c.l.b16 %v894
      %v1128 = vunpack.c.l.b16 %v908
      %v1129 = vunpack.c.l.b16 %v918
      %v1130 = vunpack.c.l.b16 %v932
      %v1131 = vunpack.c.l.b16 %v942
      %v1132 = vunpack.c.l.b16 %v956
      %v1133 = vunpack.c.l.b16 %v966
      %v1134 = vunpack.c.l.b16 %v980
      %v1135 = vunpack.c.l.b16 %v990
      %v1136 = vunpack.c.l.b16 %v1004
      %v1137 = vunpack.c.l.b16 %v1014
      %v1138 = vunpack.c.l.b16 %v1028
      %v1139 = vunpack.c.l.b16 %v1038
      %v1140 = vunpack.c.l.b16 %v1052
      %v1141 = vunpack.c.l.b16 %v1062
      %v1142 = vunpack.c.l.b16 %v1076
      %v1143 = vunpack.c.l.b16 %v1086
      %v1144 = vunpack.c.l.b16 %v1100
      %v1145 = vunpack.c.l.b16 %v1110
      %v1146 = vpack.c.b16 %v1115, %v1114
      %v1147 = vpack.c.b16 %v1117, %v1116
      %v1148 = vpack.c.b16 %v1119, %v1118
      %v1149 = vpack.c.b16 %v1121, %v1120
      %v1150 = vpack.c.b16 %v1123, %v1122
      %v1151 = vpack.c.b16 %v1125, %v1124
      %v1152 = vpack.c.b16 %v1127, %v1126
      %v1153 = vpack.c.b16 %v1129, %v1128
      %v1154 = vpack.c.b16 %v1131, %v1130
      %v1155 = vpack.c.b16 %v1133, %v1132
      %v1156 = vpack.c.b16 %v1135, %v1134
      %v1157 = vpack.c.b16 %v1137, %v1136
      %v1158 = vpack.c.b16 %v1139, %v1138
      %v1159 = vpack.c.b16 %v1141, %v1140
      %v1160 = vpack.c.b16 %v1143, %v1142
      %v1161 = vpack.c.b16 %v1145, %v1144
      %v1164 = vunpack.c.l.b16 %v1112
      %v1165 = vunpack.c.l.b16 %v1113
      %v1166 = vpack.c.b16 %v1165, %v1164
      %v1169 = vsel %vm482, %v1146, 0
      %v1172 = vsel %vm482, %v1147, 0
      %v1175 = vsel %vm482, %v1148, 0
      %v1178 = vsel %vm482, %v1149, 0
      %v1181 = vsel %vm482, %v1150, 0
      %v1184 = vsel %vm482, %v1151, 0
      %v1187 = vsel %vm482, %v1152, 0
      %v1190 = vsel %vm482, %v1153, 0
      %v1193 = vsel %vm482, %v1154, 0
      %v1196 = vsel %vm482, %v1155, 0
      %v1199 = vsel %vm482, %v1156, 0
      %v1202 = vsel %vm482, %v1157, 0
      %v1205 = vsel %vm482, %v1158, 0
      %v1208 = vsel %vm482, %v1159, 0
      %v1211 = vsel %vm482, %v1160, 0
      %v1214 = vsel %vm482, %v1161, 0
      %1216 = vmatprep.subr.bf16.mxu0 0
      %1217 = vmatpush1.bf16.msra.mxu0 %v1166
      %1218 = vmatprep.subr.bf16.mxu0 0
      %1219 = vmatpush1.bf16.msra.mxu0 0
      %1220 = vmatprep.subr.bf16.mxu0 0
      %1221 = vmatpush1.bf16.msra.mxu0 0
      %1222 = vmatprep.subr.bf16.mxu0 0
      %1223 = vmatpush1.bf16.msra.mxu0 0
      %1224 = vmatprep.subr.bf16.mxu0 0
      %1225 = vmatpush1.bf16.msra.mxu0 0
      %1226 = vmatprep.subr.bf16.mxu0 0
      %1227 = vmatpush1.bf16.msra.mxu0 0
      %1228 = vmatprep.subr.bf16.mxu0 0
      %1229 = vmatpush1.bf16.msra.mxu0 0
      %1230 = vmatprep.subr.bf16.mxu0 0
      %1231 = vmatpush1.bf16.msra.mxu0 0
      %1232 = vmatprep.subr.bf16.mxu0 0
      %1233 = vmatpush1.bf16.msra.mxu0 0
      %1234 = vmatprep.subr.bf16.mxu0 0
      %1235 = vmatpush1.bf16.msra.mxu0 0
      %1236 = vmatprep.subr.bf16.mxu0 0
      %1237 = vmatpush1.bf16.msra.mxu0 0
      %1238 = vmatprep.subr.bf16.mxu0 0
      %1239 = vmatpush1.bf16.msra.mxu0 0
      %1240 = vmatprep.subr.bf16.mxu0 0
      %1241 = vmatpush1.bf16.msra.mxu0 0
      %1242 = vmatprep.subr.bf16.mxu0 0
      %1243 = vmatpush1.bf16.msra.mxu0 0
      %1244 = vmatprep.subr.bf16.mxu0 0
      %1245 = vmatpush1.bf16.msra.mxu0 0
      %1246 = vmatprep.subr.bf16.mxu0 0
      %1247 = vmatpush1.bf16.msra.mxu0 0
      %1248 = vmatprep.mubr.bf16.mxu0 0
      %1249 = vmatmul.mubr.bf16.gmra.mrb[0].mxu0 %v1169
      %v1250 = vpop.f32.mrb[0].mxu0
      %v1251 = vadd.f32 0.0, %v1250
      %v1252 = vpop.f32.mrb[0].mxu0
      %v1253 = vpop.f32.mrb[0].mxu0
      %v1254 = vadd.f32 0.0, %v1253
      %v1255 = vpop.f32.mrb[0].mxu0
      %1256 = vmatprep.mubr.bf16.mxu0 0
      %1257 = vmatmul.mubr.bf16.gmra.mrb[0].mxu0 %v1172
      %v1258 = vpop.f32.mrb[0].mxu0
      %v1259 = vadd.f32 0.0, %v1258
      %v1260 = vpop.f32.mrb[0].mxu0
      %v1261 = vpop.f32.mrb[0].mxu0
      %v1262 = vadd.f32 0.0, %v1261
      %v1263 = vpop.f32.mrb[0].mxu0
      %1264 = vmatprep.mubr.bf16.mxu0 0
      %1265 = vmatmul.mubr.bf16.gmra.mrb[0].mxu0 %v1175
      %v1266 = vpop.f32.mrb[0].mxu0
      %v1267 = vadd.f32 0.0, %v1266
      %v1268 = vpop.f32.mrb[0].mxu0
      %v1269 = vpop.f32.mrb[0].mxu0
      %v1270 = vadd.f32 0.0, %v1269
      %v1271 = vpop.f32.mrb[0].mxu0
      %1272 = vmatprep.mubr.bf16.mxu0 0
      %1273 = vmatmul.mubr.bf16.gmra.mrb[0].mxu0 %v1178
      %v1274 = vpop.f32.mrb[0].mxu0
      %v1275 = vadd.f32 0.0, %v1274
      %v1276 = vpop.f32.mrb[0].mxu0
      %v1277 = vpop.f32.mrb[0].mxu0
      %v1278 = vadd.f32 0.0, %v1277
      %v1279 = vpop.f32.mrb[0].mxu0
      %1280 = vmatprep.mubr.bf16.mxu0 0
      %1281 = vmatmul.mubr.bf16.gmra.mrb[0].mxu0 %v1181
      %v1282 = vpop.f32.mrb[0].mxu0
      %v1283 = vadd.f32 0.0, %v1282
      %v1284 = vpop.f32.mrb[0].mxu0
      %v1285 = vpop.f32.mrb[0].mxu0
      %v1286 = vadd.f32 0.0, %v1285
      %v1287 = vpop.f32.mrb[0].mxu0
      %1288 = vmatprep.mubr.bf16.mxu0 0
      %1289 = vmatmul.mubr.bf16.gmra.mrb[0].mxu0 %v1184
      %v1290 = vpop.f32.mrb[0].mxu0
      %v1291 = vadd.f32 0.0, %v1290
      %v1292 = vpop.f32.mrb[0].mxu0
      %v1293 = vpop.f32.mrb[0].mxu0
      %v1294 = vadd.f32 0.0, %v1293
      %v1295 = vpop.f32.mrb[0].mxu0
      %1296 = vmatprep.mubr.bf16.mxu0 0
      %1297 = vmatmul.mubr.bf16.gmra.mrb[0].mxu0 %v1187
      %v1298 = vpop.f32.mrb[0].mxu0
      %v1299 = vadd.f32 0.0, %v1298
      %v1300 = vpop.f32.mrb[0].mxu0
      %v1301 = vpop.f32.mrb[0].mxu0
      %v1302 = vadd.f32 0.0, %v1301
      %v1303 = vpop.f32.mrb[0].mxu0
      %1304 = vmatprep.mubr.bf16.mxu0 0
      %1305 = vmatmul.mubr.bf16.gmra.mrb[0].mxu0 %v1190
      %v1306 = vpop.f32.mrb[0].mxu0
      %v1307 = vadd.f32 0.0, %v1306
      %v1308 = vpop.f32.mrb[0].mxu0
      %v1309 = vpop.f32.mrb[0].mxu0
      %v1310 = vadd.f32 0.0, %v1309
      %v1311 = vpop.f32.mrb[0].mxu0
      %1312 = vmatprep.mubr.bf16.mxu0 0
      %1313 = vmatmul.mubr.bf16.gmra.mrb[0].mxu0 %v1193
      %v1314 = vpop.f32.mrb[0].mxu0
      %v1315 = vadd.f32 0.0, %v1314
      %v1316 = vpop.f32.mrb[0].mxu0
      %v1317 = vpop.f32.mrb[0].mxu0
      %v1318 = vadd.f32 0.0, %v1317
      %v1319 = vpop.f32.mrb[0].mxu0
      %1320 = vmatprep.mubr.bf16.mxu0 0
      %1321 = vmatmul.mubr.bf16.gmra.mrb[0].mxu0 %v1196
      %v1322 = vpop.f32.mrb[0].mxu0
      %v1323 = vadd.f32 0.0, %v1322
      %v1324 = vpop.f32.mrb[0].mxu0
      %v1325 = vpop.f32.mrb[0].mxu0
      %v1326 = vadd.f32 0.0, %v1325
      %v1327 = vpop.f32.mrb[0].mxu0
      %1328 = vmatprep.mubr.bf16.mxu0 0
      %1329 = vmatmul.mubr.bf16.gmra.mrb[0].mxu0 %v1199
      %v1330 = vpop.f32.mrb[0].mxu0
      %v1331 = vadd.f32 0.0, %v1330
      %v1332 = vpop.f32.mrb[0].mxu0
      %v1333 = vpop.f32.mrb[0].mxu0
      %v1334 = vadd.f32 0.0, %v1333
      %v1335 = vpop.f32.mrb[0].mxu0
      %1336 = vmatprep.mubr.bf16.mxu0 0
      %1337 = vmatmul.mubr.bf16.gmra.mrb[0].mxu0 %v1202
      %v1338 = vpop.f32.mrb[0].mxu0
      %v1339 = vadd.f32 0.0, %v1338
      %v1340 = vpop.f32.mrb[0].mxu0
      %v1341 = vpop.f32.mrb[0].mxu0
      %v1342 = vadd.f32 0.0, %v1341
      %v1343 = vpop.f32.mrb[0].mxu0
      %1344 = vmatprep.mubr.bf16.mxu0 0
      %1345 = vmatmul.mubr.bf16.gmra.mrb[0].mxu0 %v1205
      %v1346 = vpop.f32.mrb[0].mxu0
      %v1347 = vadd.f32 0.0, %v1346
      %v1348 = vpop.f32.mrb[0].mxu0
      %v1349 = vpop.f32.mrb[0].mxu0
      %v1350 = vadd.f32 0.0, %v1349
      %v1351 = vpop.f32.mrb[0].mxu0
      %1352 = vmatprep.mubr.bf16.mxu0 0
      %1353 = vmatmul.mubr.bf16.gmra.mrb[0].mxu0 %v1208
      %v1354 = vpop.f32.mrb[0].mxu0
      %v1355 = vadd.f32 0.0, %v1354
      %v1356 = vpop.f32.mrb[0].mxu0
      %v1357 = vpop.f32.mrb[0].mxu0
      %v1358 = vadd.f32 0.0, %v1357
      %v1359 = vpop.f32.mrb[0].mxu0
      %1360 = vmatprep.mubr.bf16.mxu0 0
      %1361 = vmatmul.mubr.bf16.gmra.mrb[0].mxu0 %v1211
      %v1362 = vpop.f32.mrb[0].mxu0
      %v1363 = vadd.f32 0.0, %v1362
      %v1364 = vpop.f32.mrb[0].mxu0
      %v1365 = vpop.f32.mrb[0].mxu0
      %v1366 = vadd.f32 0.0, %v1365
      %v1367 = vpop.f32.mrb[0].mxu0
      %1368 = vmatprep.mubr.bf16.mxu0 0
      %1369 = vmatmul.mubr.bf16.gmra.mrb[0].mxu0 %v1214
      %v1370 = vpop.f32.mrb[0].mxu0
      %v1371 = vadd.f32 0.0, %v1370
      %v1372 = vpop.f32.mrb[0].mxu0
      %v1373 = vpop.f32.mrb[0].mxu0
      %v1374 = vadd.f32 0.0, %v1373
      %v1375 = vpop.f32.mrb[0].mxu0
      %1376 = vdwg.mxu0
      %v1377 = vadd.f32 %v692, %v1251
      %v1378 = vadd.f32 %v693, %v1254
      %v1379 = vadd.f32 %v694, %v1259
      %v1380 = vadd.f32 %v695, %v1262
      %v1381 = vadd.f32 %v696, %v1267
      %v1382 = vadd.f32 %v697, %v1270
      %v1383 = vadd.f32 %v698, %v1275
      %v1384 = vadd.f32 %v699, %v1278
      %v1385 = vadd.f32 %v700, %v1283
      %v1386 = vadd.f32 %v701, %v1286
      %v1387 = vadd.f32 %v702, %v1291
      %v1388 = vadd.f32 %v703, %v1294
      %v1389 = vadd.f32 %v704, %v1299
      %v1390 = vadd.f32 %v705, %v1302
      %v1391 = vadd.f32 %v706, %v1307
      %v1392 = vadd.f32 %v707, %v1310
      %v1393 = vadd.f32 %v708, %v1315
      %v1394 = vadd.f32 %v709, %v1318
      %v1395 = vadd.f32 %v710, %v1323
      %v1396 = vadd.f32 %v711, %v1326
      %v1397 = vadd.f32 %v712, %v1331
      %v1398 = vadd.f32 %v713, %v1334
      %v1399 = vadd.f32 %v714, %v1339
      %v1400 = vadd.f32 %v715, %v1342
      %v1401 = vadd.f32 %v716, %v1347
      %v1402 = vadd.f32 %v717, %v1350
      %v1403 = vadd.f32 %v718, %v1355
      %v1404 = vadd.f32 %v719, %v1358
      %v1405 = vadd.f32 %v720, %v1363
      %v1406 = vadd.f32 %v721, %v1366
      %v1407 = vadd.f32 %v722, %v1371
      %v1408 = vadd.f32 %v723, %v1374
      %vm1425 = vcmask 1042432
      %vm1426 = vcmask 1046532
      %vm1427 = vmor %vm1425, %vm1426
      %v1428 = vrot.slane %v314, 5
      %v1429 = vrot.slane %v1428, 4
      %v1430 = vrot.slane %v315, 5
      %v1431 = vsel %vm1427, %v1429, %v1430
      %v1432 = vrot.slane %v1430, 4
      %v1433 = vrot.slane %v316, 5
      %v1434 = vsel %vm1427, %v1432, %v1433
      %v1435 = vrot.slane %v317, 5
      %v1436 = vrot.slane %v1435, 4
      %v1437 = vrot.slane %v318, 5
      %v1438 = vsel %vm1427, %v1436, %v1437
      %v1439 = vrot.slane %v1437, 4
      %v1440 = vrot.slane %v319, 5
      %v1441 = vsel %vm1427, %v1439, %v1440
      %v1442 = vrot.slane %v320, 5
      %v1443 = vrot.slane %v1442, 4
      %v1444 = vrot.slane %v321, 5
      %v1445 = vsel %vm1427, %v1443, %v1444
      %v1446 = vrot.slane %v1444, 4
      %v1447 = vrot.slane %v322, 5
      %v1448 = vsel %vm1427, %v1446, %v1447
      %v1449 = vrot.slane %v323, 5
      %v1450 = vrot.slane %v1449, 4
      %v1451 = vrot.slane %v324, 5
      %v1452 = vsel %vm1427, %v1450, %v1451
      %v1453 = vrot.slane %v1451, 4
      %v1454 = vrot.slane %v325, 5
      %v1455 = vsel %vm1427, %v1453, %v1454
      %v1456 = vrot.slane %v326, 5
      %v1457 = vrot.slane %v1456, 4
      %v1458 = vrot.slane %v327, 5
      %v1459 = vsel %vm1427, %v1457, %v1458
      %v1460 = vrot.slane %v1458, 4
      %v1461 = vrot.slane %v328, 5
      %v1462 = vsel %vm1427, %v1460, %v1461
      %v1463 = vrot.slane %v329, 5
      %v1464 = vrot.slane %v1463, 4
      %v1465 = vrot.slane %v330, 5
      %v1466 = vsel %vm1427, %v1464, %v1465
      %v1467 = vrot.slane %v1465, 4
      %v1468 = vrot.slane %v331, 5
      %v1469 = vsel %vm1427, %v1467, %v1468
      %v1470 = vrot.slane %v332, 5
      %v1471 = vrot.slane %v1470, 4
      %v1472 = vrot.slane %v333, 5
      %v1473 = vsel %vm1427, %v1471, %v1472
      %v1474 = vrot.slane %v1472, 4
      %v1475 = vrot.slane %v334, 5
      %v1476 = vsel %vm1427, %v1474, %v1475
      %v1477 = vrot.slane %v335, 5
      %v1478 = vrot.slane %v1477, 4
      %v1479 = vrot.slane %v336, 5
      %v1480 = vsel %vm1427, %v1478, %v1479
      %v1481 = vrot.slane %v1479, 4
      %v1482 = vrot.slane %v337, 5
      %v1483 = vsel %vm1427, %v1481, %v1482
      %v1484 = vrot.slane %v338, 5
      %v1485 = vrot.slane %v1484, 4
      %v1486 = vrot.slane %v339, 5
      %v1487 = vsel %vm1427, %v1485, %v1486
      %v1488 = vrot.slane %v1486, 4
      %v1489 = vrot.slane %v340, 5
      %v1490 = vsel %vm1427, %v1488, %v1489
      %v1491 = vrot.slane %v341, 5
      %v1492 = vrot.slane %v1491, 4
      %v1493 = vrot.slane %v342, 5
      %v1494 = vsel %vm1427, %v1492, %v1493
      %v1495 = vrot.slane %v1493, 4
      %v1496 = vrot.slane %v343, 5
      %v1497 = vsel %vm1427, %v1495, %v1496
      %v1498 = vrot.slane %v344, 5
      %v1499 = vrot.slane %v1498, 4
      %v1500 = vrot.slane %v345, 5
      %v1501 = vsel %vm1427, %v1499, %v1500
      %v1502 = vrot.slane %v1500, 4
      %v1503 = vrot.slane %v346, 5
      %v1504 = vsel %vm1427, %v1502, %v1503
      %v1505 = vrot.slane %v347, 5
      %v1506 = vrot.slane %v1505, 4
      %v1507 = vrot.slane %v348, 5
      %v1508 = vsel %vm1427, %v1506, %v1507
      %v1509 = vrot.slane %v1507, 4
      %v1510 = vrot.slane %v349, 5
      %v1511 = vsel %vm1427, %v1509, %v1510
      %v1512 = vrot.slane %v350, 5
      %v1513 = vrot.slane %v1512, 4
      %v1514 = vrot.slane %v351, 5
      %v1515 = vsel %vm1427, %v1513, %v1514
      %v1516 = vrot.slane %v1514, 4
      %v1517 = vrot.slane %v352, 5
      %v1518 = vsel %vm1427, %v1516, %v1517
      %v1519 = vrot.slane %v353, 5
      %v1520 = vrot.slane %v1519, 4
      %v1521 = vrot.slane %v354, 5
      %v1522 = vsel %vm1427, %v1520, %v1521
      %v1523 = vrot.slane %v1521, 4
      %v1524 = vrot.slane %v355, 5
      %v1525 = vsel %vm1427, %v1523, %v1524
      %v1526 = vrot.slane %v356, 5
      %v1527 = vrot.slane %v1526, 4
      %v1528 = vrot.slane %v357, 5
      %v1529 = vsel %vm1427, %v1527, %v1528
      %v1530 = vrot.slane %v1528, 4
      %v1531 = vrot.slane %v358, 5
      %v1532 = vsel %vm1427, %v1530, %v1531
      %v1533 = vrot.slane %v359, 5
      %v1534 = vrot.slane %v1533, 4
      %v1535 = vrot.slane %v360, 5
      %v1536 = vsel %vm1427, %v1534, %v1535
      %v1537 = vrot.slane %v1535, 4
      %v1538 = vrot.slane %v361, 5
      %v1539 = vsel %vm1427, %v1537, %v1538
      %s1540 = scalar_lea.vmem %s267, 16
      %v1541 = vld [vmem:[%s1540] sm:$0xf]
      %v1542 = vld [vmem:[%s1540 + $0x4] sm:$0xf]
      %v1543 = vunpack.c.l.b16 %v1431
      %v1544 = vunpack.c.l.b16 %v1434
      %v1545 = vunpack.c.l.b16 %v1438
      %v1546 = vunpack.c.l.b16 %v1441
      %v1547 = vunpack.c.l.b16 %v1445
      %v1548 = vunpack.c.l.b16 %v1448
      %v1549 = vunpack.c.l.b16 %v1452
      %v1550 = vunpack.c.l.b16 %v1455
      %v1551 = vunpack.c.l.b16 %v1459
      %v1552 = vunpack.c.l.b16 %v1462
      %v1553 = vunpack.c.l.b16 %v1466
      %v1554 = vunpack.c.l.b16 %v1469
      %v1555 = vunpack.c.l.b16 %v1473
      %v1556 = vunpack.c.l.b16 %v1476
      %v1557 = vunpack.c.l.b16 %v1480
      %v1558 = vunpack.c.l.b16 %v1483
      %v1559 = vunpack.c.l.b16 %v1487
      %v1560 = vunpack.c.l.b16 %v1490
      %v1561 = vunpack.c.l.b16 %v1494
      %v1562 = vunpack.c.l.b16 %v1497
      %v1563 = vunpack.c.l.b16 %v1501
      %v1564 = vunpack.c.l.b16 %v1504
      %v1565 = vunpack.c.l.b16 %v1508
      %v1566 = vunpack.c.l.b16 %v1511
      %v1567 = vunpack.c.l.b16 %v1515
      %v1568 = vunpack.c.l.b16 %v1518
      %v1569 = vunpack.c.l.b16 %v1522
      %v1570 = vunpack.c.l.b16 %v1525
      %v1571 = vunpack.c.l.b16 %v1529
      %v1572 = vunpack.c.l.b16 %v1532
      %v1573 = vunpack.c.l.b16 %v1536
      %v1574 = vunpack.c.l.b16 %v1539
      %v1575 = vpack.c.b16 %v1544, %v1543
      %v1576 = vpack.c.b16 %v1546, %v1545
      %v1577 = vpack.c.b16 %v1548, %v1547
      %v1578 = vpack.c.b16 %v1550, %v1549
      %v1579 = vpack.c.b16 %v1552, %v1551
      %v1580 = vpack.c.b16 %v1554, %v1553
      %v1581 = vpack.c.b16 %v1556, %v1555
      %v1582 = vpack.c.b16 %v1558, %v1557
      %v1583 = vpack.c.b16 %v1560, %v1559
      %v1584 = vpack.c.b16 %v1562, %v1561
      %v1585 = vpack.c.b16 %v1564, %v1563
      %v1586 = vpack.c.b16 %v1566, %v1565
      %v1587 = vpack.c.b16 %v1568, %v1567
      %v1588 = vpack.c.b16 %v1570, %v1569
      %v1589 = vpack.c.b16 %v1572, %v1571
      %v1590 = vpack.c.b16 %v1574, %v1573
      %v1593 = vunpack.c.l.b16 %v1541
      %v1594 = vunpack.c.l.b16 %v1542
      %v1595 = vpack.c.b16 %v1594, %v1593
      %v1598 = vsel %vm482, %v1575, 0
      %v1601 = vsel %vm482, %v1576, 0
      %v1604 = vsel %vm482, %v1577, 0
      %v1607 = vsel %vm482, %v1578, 0
      %v1610 = vsel %vm482, %v1579, 0
      %v1613 = vsel %vm482, %v1580, 0
      %v1616 = vsel %vm482, %v1581, 0
      %v1619 = vsel %vm482, %v1582, 0
      %v1622 = vsel %vm482, %v1583, 0
      %v1625 = vsel %vm482, %v1584, 0
      %v1628 = vsel %vm482, %v1585, 0
      %v1631 = vsel %vm482, %v1586, 0
      %v1634 = vsel %vm482, %v1587, 0
      %v1637 = vsel %vm482, %v1588, 0
      %v1640 = vsel %vm482, %v1589, 0
      %v1643 = vsel %vm482, %v1590, 0
      %1645 = vmatprep.subr.bf16.mxu0 0
      %1646 = vmatpush1.bf16.msra.mxu0 %v1595
      %1647 = vmatprep.subr.bf16.mxu0 0
      %1648 = vmatpush1.bf16.msra.mxu0 0
      %1649 = vmatprep.subr.bf16.mxu0 0
      %1650 = vmatpush1.bf16.msra.mxu0 0
      %1651 = vmatprep.subr.bf16.mxu0 0
      %1652 = vmatpush1.bf16.msra.mxu0 0
      %1653 = vmatprep.subr.bf16.mxu0 0
      %1654 = vmatpush1.bf16.msra.mxu0 0
      %1655 = vmatprep.subr.bf16.mxu0 0
      %1656 = vmatpush1.bf16.msra.mxu0 0
      %1657 = vmatprep.subr.bf16.mxu0 0
      %1658 = vmatpush1.bf16.msra.mxu0 0
      %1659 = vmatprep.subr.bf16.mxu0 0
      %1660 = vmatpush1.bf16.msra.mxu0 0
      %1661 = vmatprep.subr.bf16.mxu0 0
      %1662 = vmatpush1.bf16.msra.mxu0 0
      %1663 = vmatprep.subr.bf16.mxu0 0
      %1664 = vmatpush1.bf16.msra.mxu0 0
      %1665 = vmatprep.subr.bf16.mxu0 0
      %1666 = vmatpush1.bf16.msra.mxu0 0
      %1667 = vmatprep.subr.bf16.mxu0 0
      %1668 = vmatpush1.bf16.msra.mxu0 0
      %1669 = vmatprep.subr.bf16.mxu0 0
      %1670 = vmatpush1.bf16.msra.mxu0 0
      %1671 = vmatprep.subr.bf16.mxu0 0
      %1672 = vmatpush1.bf16.msra.mxu0 0
      %1673 = vmatprep.subr.bf16.mxu0 0
      %1674 = vmatpush1.bf16.msra.mxu0 0
      %1675 = vmatprep.subr.bf16.mxu0 0
      %1676 = vmatpush1.bf16.msra.mxu0 0
      %1677 = vmatprep.mubr.bf16.mxu0 0
      %1678 = vmatmul.mubr.bf16.gmra.mrb[0].mxu0 %v1598
      %v1679 = vpop.f32.mrb[0].mxu0
      %v1680 = vadd.f32 0.0, %v1679
      %v1681 = vpop.f32.mrb[0].mxu0
      %v1682 = vpop.f32.mrb[0].mxu0
      %v1683 = vadd.f32 0.0, %v1682
      %v1684 = vpop.f32.mrb[0].mxu0
      %1685 = vmatprep.mubr.bf16.mxu0 0
      %1686 = vmatmul.mubr.bf16.gmra.mrb[0].mxu0 %v1601
      %v1687 = vpop.f32.mrb[0].mxu0
      %v1688 = vadd.f32 0.0, %v1687
      %v1689 = vpop.f32.mrb[0].mxu0
      %v1690 = vpop.f32.mrb[0].mxu0
      %v1691 = vadd.f32 0.0, %v1690
      %v1692 = vpop.f32.mrb[0].mxu0
      %1693 = vmatprep.mubr.bf16.mxu0 0
      %1694 = vmatmul.mubr.bf16.gmra.mrb[0].mxu0 %v1604
      %v1695 = vpop.f32.mrb[0].mxu0
      %v1696 = vadd.f32 0.0, %v1695
      %v1697 = vpop.f32.mrb[0].mxu0
      %v1698 = vpop.f32.mrb[0].mxu0
      %v1699 = vadd.f32 0.0, %v1698
      %v1700 = vpop.f32.mrb[0].mxu0
      %1701 = vmatprep.mubr.bf16.mxu0 0
      %1702 = vmatmul.mubr.bf16.gmra.mrb[0].mxu0 %v1607
      %v1703 = vpop.f32.mrb[0].mxu0
      %v1704 = vadd.f32 0.0, %v1703
      %v1705 = vpop.f32.mrb[0].mxu0
      %v1706 = vpop.f32.mrb[0].mxu0
      %v1707 = vadd.f32 0.0, %v1706
      %v1708 = vpop.f32.mrb[0].mxu0
      %1709 = vmatprep.mubr.bf16.mxu0 0
      %1710 = vmatmul.mubr.bf16.gmra.mrb[0].mxu0 %v1610
      %v1711 = vpop.f32.mrb[0].mxu0
      %v1712 = vadd.f32 0.0, %v1711
      %v1713 = vpop.f32.mrb[0].mxu0
      %v1714 = vpop.f32.mrb[0].mxu0
      %v1715 = vadd.f32 0.0, %v1714
      %v1716 = vpop.f32.mrb[0].mxu0
      %1717 = vmatprep.mubr.bf16.mxu0 0
      %1718 = vmatmul.mubr.bf16.gmra.mrb[0].mxu0 %v1613
      %v1719 = vpop.f32.mrb[0].mxu0
      %v1720 = vadd.f32 0.0, %v1719
      %v1721 = vpop.f32.mrb[0].mxu0
      %v1722 = vpop.f32.mrb[0].mxu0
      %v1723 = vadd.f32 0.0, %v1722
      %v1724 = vpop.f32.mrb[0].mxu0
      %1725 = vmatprep.mubr.bf16.mxu0 0
      %1726 = vmatmul.mubr.bf16.gmra.mrb[0].mxu0 %v1616
      %v1727 = vpop.f32.mrb[0].mxu0
      %v1728 = vadd.f32 0.0, %v1727
      %v1729 = vpop.f32.mrb[0].mxu0
      %v1730 = vpop.f32.mrb[0].mxu0
      %v1731 = vadd.f32 0.0, %v1730
      %v1732 = vpop.f32.mrb[0].mxu0
      %1733 = vmatprep.mubr.bf16.mxu0 0
      %1734 = vmatmul.mubr.bf16.gmra.mrb[0].mxu0 %v1619
      %v1735 = vpop.f32.mrb[0].mxu0
      %v1736 = vadd.f32 0.0, %v1735
      %v1737 = vpop.f32.mrb[0].mxu0
      %v1738 = vpop.f32.mrb[0].mxu0
      %v1739 = vadd.f32 0.0, %v1738
      %v1740 = vpop.f32.mrb[0].mxu0
      %1741 = vmatprep.mubr.bf16.mxu0 0
      %1742 = vmatmul.mubr.bf16.gmra.mrb[0].mxu0 %v1622
      %v1743 = vpop.f32.mrb[0].mxu0
      %v1744 = vadd.f32 0.0, %v1743
      %v1745 = vpop.f32.mrb[0].mxu0
      %v1746 = vpop.f32.mrb[0].mxu0
      %v1747 = vadd.f32 0.0, %v1746
      %v1748 = vpop.f32.mrb[0].mxu0
      %1749 = vmatprep.mubr.bf16.mxu0 0
      %1750 = vmatmul.mubr.bf16.gmra.mrb[0].mxu0 %v1625
      %v1751 = vpop.f32.mrb[0].mxu0
      %v1752 = vadd.f32 0.0, %v1751
      %v1753 = vpop.f32.mrb[0].mxu0
      %v1754 = vpop.f32.mrb[0].mxu0
      %v1755 = vadd.f32 0.0, %v1754
      %v1756 = vpop.f32.mrb[0].mxu0
      %1757 = vmatprep.mubr.bf16.mxu0 0
      %1758 = vmatmul.mubr.bf16.gmra.mrb[0].mxu0 %v1628
      %v1759 = vpop.f32.mrb[0].mxu0
      %v1760 = vadd.f32 0.0, %v1759
      %v1761 = vpop.f32.mrb[0].mxu0
      %v1762 = vpop.f32.mrb[0].mxu0
      %v1763 = vadd.f32 0.0, %v1762
      %v1764 = vpop.f32.mrb[0].mxu0
      %1765 = vmatprep.mubr.bf16.mxu0 0
      %1766 = vmatmul.mubr.bf16.gmra.mrb[0].mxu0 %v1631
      %v1767 = vpop.f32.mrb[0].mxu0
      %v1768 = vadd.f32 0.0, %v1767
      %v1769 = vpop.f32.mrb[0].mxu0
      %v1770 = vpop.f32.mrb[0].mxu0
      %v1771 = vadd.f32 0.0, %v1770
      %v1772 = vpop.f32.mrb[0].mxu0
      %1773 = vmatprep.mubr.bf16.mxu0 0
      %1774 = vmatmul.mubr.bf16.gmra.mrb[0].mxu0 %v1634
      %v1775 = vpop.f32.mrb[0].mxu0
      %v1776 = vadd.f32 0.0, %v1775
      %v1777 = vpop.f32.mrb[0].mxu0
      %v1778 = vpop.f32.mrb[0].mxu0
      %v1779 = vadd.f32 0.0, %v1778
      %v1780 = vpop.f32.mrb[0].mxu0
      %1781 = vmatprep.mubr.bf16.mxu0 0
      %1782 = vmatmul.mubr.bf16.gmra.mrb[0].mxu0 %v1637
      %v1783 = vpop.f32.mrb[0].mxu0
      %v1784 = vadd.f32 0.0, %v1783
      %v1785 = vpop.f32.mrb[0].mxu0
      %v1786 = vpop.f32.mrb[0].mxu0
      %v1787 = vadd.f32 0.0, %v1786
      %v1788 = vpop.f32.mrb[0].mxu0
      %1789 = vmatprep.mubr.bf16.mxu0 0
      %1790 = vmatmul.mubr.bf16.gmra.mrb[0].mxu0 %v1640
      %v1791 = vpop.f32.mrb[0].mxu0
      %v1792 = vadd.f32 0.0, %v1791
      %v1793 = vpop.f32.mrb[0].mxu0
      %v1794 = vpop.f32.mrb[0].mxu0
      %v1795 = vadd.f32 0.0, %v1794
      %v1796 = vpop.f32.mrb[0].mxu0
      %1797 = vmatprep.mubr.bf16.mxu0 0
      %1798 = vmatmul.mubr.bf16.gmra.mrb[0].mxu0 %v1643
      %v1799 = vpop.f32.mrb[0].mxu0
      %v1800 = vadd.f32 0.0, %v1799
      %v1801 = vpop.f32.mrb[0].mxu0
      %v1802 = vpop.f32.mrb[0].mxu0
      %v1803 = vadd.f32 0.0, %v1802
      %v1804 = vpop.f32.mrb[0].mxu0
      %1805 = vdwg.mxu0
      %v1806 = vadd.f32 %v1377, %v1680
      %v1807 = vadd.f32 %v1378, %v1683
      %v1808 = vadd.f32 %v1379, %v1688
      %v1809 = vadd.f32 %v1380, %v1691
      %v1810 = vadd.f32 %v1381, %v1696
      %v1811 = vadd.f32 %v1382, %v1699
      %v1812 = vadd.f32 %v1383, %v1704
      %v1813 = vadd.f32 %v1384, %v1707
      %v1814 = vadd.f32 %v1385, %v1712
      %v1815 = vadd.f32 %v1386, %v1715
      %v1816 = vadd.f32 %v1387, %v1720
      %v1817 = vadd.f32 %v1388, %v1723
      %v1818 = vadd.f32 %v1389, %v1728
      %v1819 = vadd.f32 %v1390, %v1731
      %v1820 = vadd.f32 %v1391, %v1736
      %v1821 = vadd.f32 %v1392, %v1739
      %v1822 = vadd.f32 %v1393, %v1744
      %v1823 = vadd.f32 %v1394, %v1747
      %v1824 = vadd.f32 %v1395, %v1752
      %v1825 = vadd.f32 %v1396, %v1755
      %v1826 = vadd.f32 %v1397, %v1760
      %v1827 = vadd.f32 %v1398, %v1763
      %v1828 = vadd.f32 %v1399, %v1768
      %v1829 = vadd.f32 %v1400, %v1771
      %v1830 = vadd.f32 %v1401, %v1776
      %v1831 = vadd.f32 %v1402, %v1779
      %v1832 = vadd.f32 %v1403, %v1784
      %v1833 = vadd.f32 %v1404, %v1787
      %v1834 = vadd.f32 %v1405, %v1792
      %v1835 = vadd.f32 %v1406, %v1795
      %v1836 = vadd.f32 %v1407, %v1800
      %v1837 = vadd.f32 %v1408, %v1803
      %vm1838 = vcmask 31744
      %1839 = vst.msk [vmem:[#allocation2] sm:$0xff] %vm1838, %v1806
      %1840 = vst.msk [vmem:[#allocation2 + $0x8] sm:$0xff] %vm1838, %v1807
      %1841 = vst.msk [vmem:[#allocation2 + $0x10] sm:$0xff] %vm1838, %v1808
      %1842 = vst.msk [vmem:[#allocation2 + $0x18] sm:$0xff] %vm1838, %v1809
      %1843 = vst.msk [vmem:[#allocation2 + $0x20] sm:$0xff] %vm1838, %v1810
      %1844 = vst.msk [vmem:[#allocation2 + $0x28] sm:$0xff] %vm1838, %v1811
      %1845 = vst.msk [vmem:[#allocation2 + $0x30] sm:$0xff] %vm1838, %v1812
      %1846 = vst.msk [vmem:[#allocation2 + $0x38] sm:$0xff] %vm1838, %v1813
      %1847 = vst.msk [vmem:[#allocation2 + $0x40] sm:$0xff] %vm1838, %v1814
      %1848 = vst.msk [vmem:[#allocation2 + $0x48] sm:$0xff] %vm1838, %v1815
      %1849 = vst.msk [vmem:[#allocation2 + $0x50] sm:$0xff] %vm1838, %v1816
      %1850 = vst.msk [vmem:[#allocation2 + $0x58] sm:$0xff] %vm1838, %v1817
      %1851 = vst.msk [vmem:[#allocation2 + $0x60] sm:$0xff] %vm1838, %v1818
      %1852 = vst.msk [vmem:[#allocation2 + $0x68] sm:$0xff] %vm1838, %v1819
      %1853 = vst.msk [vmem:[#allocation2 + $0x70] sm:$0xff] %vm1838, %v1820
      %1854 = vst.msk [vmem:[#allocation2 + $0x78] sm:$0xff] %vm1838, %v1821
      %1855 = vst.msk [vmem:[#allocation2 + $0x80] sm:$0xff] %vm1838, %v1822
      %1856 = vst.msk [vmem:[#allocation2 + $0x88] sm:$0xff] %vm1838, %v1823
      %1857 = vst.msk [vmem:[#allocation2 + $0x90] sm:$0xff] %vm1838, %v1824
      %1858 = vst.msk [vmem:[#allocation2 + $0x98] sm:$0xff] %vm1838, %v1825
      %1859 = vst.msk [vmem:[#allocation2 + $0xa0] sm:$0xff] %vm1838, %v1826
      %1860 = vst.msk [vmem:[#allocation2 + $0xa8] sm:$0xff] %vm1838, %v1827
      %1861 = vst.msk [vmem:[#allocation2 + $0xb0] sm:$0xff] %vm1838, %v1828
      %1862 = vst.msk [vmem:[#allocation2 + $0xb8] sm:$0xff] %vm1838, %v1829
      %1863 = vst.msk [vmem:[#allocation2 + $0xc0] sm:$0xff] %vm1838, %v1830
      %1864 = vst.msk [vmem:[#allocation2 + $0xc8] sm:$0xff] %vm1838, %v1831
      %1865 = vst.msk [vmem:[#allocation2 + $0xd0] sm:$0xff] %vm1838, %v1832
      %1866 = vst.msk [vmem:[#allocation2 + $0xd8] sm:$0xff] %vm1838, %v1833
      %1867 = vst.msk [vmem:[#allocation2 + $0xe0] sm:$0xff] %vm1838, %v1834
      %1868 = vst.msk [vmem:[#allocation2 + $0xe8] sm:$0xff] %vm1838, %v1835
      %1869 = vst.msk [vmem:[#allocation2 + $0xf0] sm:$0xff] %vm1838, %v1836
      %1870 = vst.msk [vmem:[#allocation2 + $0xf8] sm:$0xff] %vm1838, %v1837
      %p1871 = scmp.eq.s32.totalorder %s22, 2
      // Predicated region
      $region41: #{tpu_custom_call.1} parent=35 // pred_check
        %p1872 = pneg %p1871
      $region42: #{tpu_custom_call.1} parent=35 // pred_check_branch
        %1874 = sbr.rel (%p1872) target = $region44
      $region43: #{tpu_custom_call.1} parent=35 // pred_region
        %v1875 = vld [vmem:[#allocation2] sm:$0xff]
        %v1876 = vld [vmem:[#allocation2 + $0x8] sm:$0xff]
        %v1877 = vld [vmem:[#allocation2 + $0x10] sm:$0xff]
        %v1878 = vld [vmem:[#allocation2 + $0x18] sm:$0xff]
        %v1879 = vld [vmem:[#allocation2 + $0x20] sm:$0xff]
        %v1880 = vld [vmem:[#allocation2 + $0x28] sm:$0xff]
        %v1881 = vld [vmem:[#allocation2 + $0x30] sm:$0xff]
        %v1882 = vld [vmem:[#allocation2 + $0x38] sm:$0xff]
        %v1883 = vld [vmem:[#allocation2 + $0x40] sm:$0xff]
        %v1884 = vld [vmem:[#allocation2 + $0x48] sm:$0xff]
        %v1885 = vld [vmem:[#allocation2 + $0x50] sm:$0xff]
        %v1886 = vld [vmem:[#allocation2 + $0x58] sm:$0xff]
        %v1887 = vld [vmem:[#allocation2 + $0x60] sm:$0xff]
        %v1888 = vld [vmem:[#allocation2 + $0x68] sm:$0xff]
        %v1889 = vld [vmem:[#allocation2 + $0x70] sm:$0xff]
        %v1890 = vld [vmem:[#allocation2 + $0x78] sm:$0xff]
        %v1891 = vld [vmem:[#allocation2 + $0x80] sm:$0xff]
        %v1892 = vld [vmem:[#allocation2 + $0x88] sm:$0xff]
        %v1893 = vld [vmem:[#allocation2 + $0x90] sm:$0xff]
        %v1894 = vld [vmem:[#allocation2 + $0x98] sm:$0xff]
        %v1895 = vld [vmem:[#allocation2 + $0xa0] sm:$0xff]
        %v1896 = vld [vmem:[#allocation2 + $0xa8] sm:$0xff]
        %v1897 = vld [vmem:[#allocation2 + $0xb0] sm:$0xff]
        %v1898 = vld [vmem:[#allocation2 + $0xb8] sm:$0xff]
        %v1899 = vld [vmem:[#allocation2 + $0xc0] sm:$0xff]
        %v1900 = vld [vmem:[#allocation2 + $0xc8] sm:$0xff]
        %v1901 = vld [vmem:[#allocation2 + $0xd0] sm:$0xff]
        %v1902 = vld [vmem:[#allocation2 + $0xd8] sm:$0xff]
        %v1903 = vld [vmem:[#allocation2 + $0xe0] sm:$0xff]
        %v1904 = vld [vmem:[#allocation2 + $0xe8] sm:$0xff]
        %v1905 = vld [vmem:[#allocation2 + $0xf0] sm:$0xff]
        %v1906 = vld [vmem:[#allocation2 + $0xf8] sm:$0xff]
        %v1907 = vld [vmem:[%s2] sm:$0x1]
        %v1909 = vlaneseq
        %v1910 = vshrl.u32 %v1909, 7
        %v1911 = vsub.s32 0, %v1910
        %v1912 = vrot.slane %v1907, %v1911
        %v1914 = vmul.f32 %v1875, %v1912
        %v1915 = vmul.f32 %v1876, %v1912
        %v1916 = vmul.f32 %v1877, %v1912
        %v1917 = vmul.f32 %v1878, %v1912
        %v1918 = vmul.f32 %v1879, %v1912
        %v1919 = vmul.f32 %v1880, %v1912
        %v1920 = vmul.f32 %v1881, %v1912
        %v1921 = vmul.f32 %v1882, %v1912
        %v1922 = vmul.f32 %v1883, %v1912
        %v1923 = vmul.f32 %v1884, %v1912
        %v1924 = vmul.f32 %v1885, %v1912
        %v1925 = vmul.f32 %v1886, %v1912
        %v1926 = vmul.f32 %v1887, %v1912
        %v1927 = vmul.f32 %v1888, %v1912
        %v1928 = vmul.f32 %v1889, %v1912
        %v1929 = vmul.f32 %v1890, %v1912
        %v1930 = vmul.f32 %v1891, %v1912
        %v1931 = vmul.f32 %v1892, %v1912
        %v1932 = vmul.f32 %v1893, %v1912
        %v1933 = vmul.f32 %v1894, %v1912
        %v1934 = vmul.f32 %v1895, %v1912
        %v1935 = vmul.f32 %v1896, %v1912
        %v1936 = vmul.f32 %v1897, %v1912
        %v1937 = vmul.f32 %v1898, %v1912
        %v1938 = vmul.f32 %v1899, %v1912
        %v1939 = vmul.f32 %v1900, %v1912
        %v1940 = vmul.f32 %v1901, %v1912
        %v1941 = vmul.f32 %v1902, %v1912
        %v1942 = vmul.f32 %v1903, %v1912
        %v1943 = vmul.f32 %v1904, %v1912
        %v1944 = vmul.f32 %v1905, %v1912
        %v1945 = vmul.f32 %v1906, %v1912
        %v1946 = vld [vmem:[%s3] sm:$0x1]
        %v1948 = vlaneseq
        %v1949 = vshrl.u32 %v1948, 7
        %v1950 = vsub.s32 0, %v1949
        %v1951 = vrot.slane %v1946, %v1950
        %v1953 = vadd.f32 %v1914, %v1951
        %v1954 = vadd.f32 %v1915, %v1951
        %v1955 = vadd.f32 %v1916, %v1951
        %v1956 = vadd.f32 %v1917, %v1951
        %v1957 = vadd.f32 %v1918, %v1951
        %v1958 = vadd.f32 %v1919, %v1951
        %v1959 = vadd.f32 %v1920, %v1951
        %v1960 = vadd.f32 %v1921, %v1951
        %v1961 = vadd.f32 %v1922, %v1951
        %v1962 = vadd.f32 %v1923, %v1951
        %v1963 = vadd.f32 %v1924, %v1951
        %v1964 = vadd.f32 %v1925, %v1951
        %v1965 = vadd.f32 %v1926, %v1951
        %v1966 = vadd.f32 %v1927, %v1951
        %v1967 = vadd.f32 %v1928, %v1951
        %v1968 = vadd.f32 %v1929, %v1951
        %v1969 = vadd.f32 %v1930, %v1951
        %v1970 = vadd.f32 %v1931, %v1951
        %v1971 = vadd.f32 %v1932, %v1951
        %v1972 = vadd.f32 %v1933, %v1951
        %v1973 = vadd.f32 %v1934, %v1951
        %v1974 = vadd.f32 %v1935, %v1951
        %v1975 = vadd.f32 %v1936, %v1951
        %v1976 = vadd.f32 %v1937, %v1951
        %v1977 = vadd.f32 %v1938, %v1951
        %v1978 = vadd.f32 %v1939, %v1951
        %v1979 = vadd.f32 %v1940, %v1951
        %v1980 = vadd.f32 %v1941, %v1951
        %v1981 = vadd.f32 %v1942, %v1951
        %v1982 = vadd.f32 %v1943, %v1951
        %v1983 = vadd.f32 %v1944, %v1951
        %v1984 = vadd.f32 %v1945, %v1951
        %v1985 = vpack.c.bf16 %v1954, %v1953
        %v1986 = vpack.c.bf16 %v1956, %v1955
        %v1987 = vpack.c.bf16 %v1958, %v1957
        %v1988 = vpack.c.bf16 %v1960, %v1959
        %v1989 = vpack.c.bf16 %v1962, %v1961
        %v1990 = vpack.c.bf16 %v1964, %v1963
        %v1991 = vpack.c.bf16 %v1966, %v1965
        %v1992 = vpack.c.bf16 %v1968, %v1967
        %v1993 = vpack.c.bf16 %v1970, %v1969
        %v1994 = vpack.c.bf16 %v1972, %v1971
        %v1995 = vpack.c.bf16 %v1974, %v1973
        %v1996 = vpack.c.bf16 %v1976, %v1975
        %v1997 = vpack.c.bf16 %v1978, %v1977
        %v1998 = vpack.c.bf16 %v1980, %v1979
        %v1999 = vpack.c.bf16 %v1982, %v1981
        %v2000 = vpack.c.bf16 %v1984, %v1983
        %v2017 = vunpack.c.l.b16 %v1985
        %v2018 = vunpack.c.h.b16 %v1985
        %v2019 = vunpack.c.l.b16 %v1986
        %v2020 = vunpack.c.h.b16 %v1986
        %v2021 = vunpack.c.l.b16 %v1987
        %v2022 = vunpack.c.h.b16 %v1987
        %v2023 = vunpack.c.l.b16 %v1988
        %v2024 = vunpack.c.h.b16 %v1988
        %v2025 = vunpack.c.l.b16 %v1989
        %v2026 = vunpack.c.h.b16 %v1989
        %v2027 = vunpack.c.l.b16 %v1990
        %v2028 = vunpack.c.h.b16 %v1990
        %v2029 = vunpack.c.l.b16 %v1991
        %v2030 = vunpack.c.h.b16 %v1991
        %v2031 = vunpack.c.l.b16 %v1992
        %v2032 = vunpack.c.h.b16 %v1992
        %v2033 = vunpack.c.l.b16 %v1993
        %v2034 = vunpack.c.h.b16 %v1993
        %v2035 = vunpack.c.l.b16 %v1994
        %v2036 = vunpack.c.h.b16 %v1994
        %v2037 = vunpack.c.l.b16 %v1995
        %v2038 = vunpack.c.h.b16 %v1995
        %v2039 = vunpack.c.l.b16 %v1996
        %v2040 = vunpack.c.h.b16 %v1996
        %v2041 = vunpack.c.l.b16 %v1997
        %v2042 = vunpack.c.h.b16 %v1997
        %v2043 = vunpack.c.l.b16 %v1998
        %v2044 = vunpack.c.h.b16 %v1998
        %v2045 = vunpack.c.l.b16 %v1999
        %v2046 = vunpack.c.h.b16 %v1999
        %v2047 = vunpack.c.l.b16 %v2000
        %v2048 = vunpack.c.h.b16 %v2000
        %v2049 = vpack.c.b16 %v2017, %v2017
        %v2050 = vpack.c.b16 %v2018, %v2018
        %v2051 = vpack.c.b16 %v2019, %v2019
        %v2052 = vpack.c.b16 %v2020, %v2020
        %v2053 = vpack.c.b16 %v2021, %v2021
        %v2054 = vpack.c.b16 %v2022, %v2022
        %v2055 = vpack.c.b16 %v2023, %v2023
        %v2056 = vpack.c.b16 %v2024, %v2024
        %v2057 = vpack.c.b16 %v2025, %v2025
        %v2058 = vpack.c.b16 %v2026, %v2026
        %v2059 = vpack.c.b16 %v2027, %v2027
        %v2060 = vpack.c.b16 %v2028, %v2028
        %v2061 = vpack.c.b16 %v2029, %v2029
        %v2062 = vpack.c.b16 %v2030, %v2030
        %v2063 = vpack.c.b16 %v2031, %v2031
        %v2064 = vpack.c.b16 %v2032, %v2032
        %v2065 = vpack.c.b16 %v2033, %v2033
        %v2066 = vpack.c.b16 %v2034, %v2034
        %v2067 = vpack.c.b16 %v2035, %v2035
        %v2068 = vpack.c.b16 %v2036, %v2036
        %v2069 = vpack.c.b16 %v2037, %v2037
        %v2070 = vpack.c.b16 %v2038, %v2038
        %v2071 = vpack.c.b16 %v2039, %v2039
        %v2072 = vpack.c.b16 %v2040, %v2040
        %v2073 = vpack.c.b16 %v2041, %v2041
        %v2074 = vpack.c.b16 %v2042, %v2042
        %v2075 = vpack.c.b16 %v2043, %v2043
        %v2076 = vpack.c.b16 %v2044, %v2044
        %v2077 = vpack.c.b16 %v2045, %v2045
        %v2078 = vpack.c.b16 %v2046, %v2046
        %v2079 = vpack.c.b16 %v2047, %v2047
        %v2080 = vpack.c.b16 %v2048, %v2048
        %vm2113 = vcmask 27648
        %2114 = vst.msk [vmem:[%s273] sm:$0xf] %vm2113, %v2049
        %2115 = vst.msk [vmem:[%s273 + $0x4] sm:$0xf] %vm2113, %v2050
        %2116 = vst.msk [vmem:[%s273 + $0x8] sm:$0xf] %vm2113, %v2051
        %2117 = vst.msk [vmem:[%s273 + $0xc] sm:$0xf] %vm2113, %v2052
        %2118 = vst.msk [vmem:[%s273 + $0x10] sm:$0xf] %vm2113, %v2053
        %2119 = vst.msk [vmem:[%s273 + $0x14] sm:$0xf] %vm2113, %v2054
        %2120 = vst.msk [vmem:[%s273 + $0x18] sm:$0xf] %vm2113, %v2055
        %2121 = vst.msk [vmem:[%s273 + $0x1c] sm:$0xf] %vm2113, %v2056
        %2122 = vst.msk [vmem:[%s273 + $0x20] sm:$0xf] %vm2113, %v2057
        %2123 = vst.msk [vmem:[%s273 + $0x24] sm:$0xf] %vm2113, %v2058
        %2124 = vst.msk [vmem:[%s273 + $0x28] sm:$0xf] %vm2113, %v2059
        %2125 = vst.msk [vmem:[%s273 + $0x2c] sm:$0xf] %vm2113, %v2060
        %2126 = vst.msk [vmem:[%s273 + $0x30] sm:$0xf] %vm2113, %v2061
        %2127 = vst.msk [vmem:[%s273 + $0x34] sm:$0xf] %vm2113, %v2062
        %2128 = vst.msk [vmem:[%s273 + $0x38] sm:$0xf] %vm2113, %v2063
        %2129 = vst.msk [vmem:[%s273 + $0x3c] sm:$0xf] %vm2113, %v2064
        %2130 = vst.msk [vmem:[%s273 + $0x40] sm:$0xf] %vm2113, %v2065
        %2131 = vst.msk [vmem:[%s273 + $0x44] sm:$0xf] %vm2113, %v2066
        %2132 = vst.msk [vmem:[%s273 + $0x48] sm:$0xf] %vm2113, %v2067
        %2133 = vst.msk [vmem:[%s273 + $0x4c] sm:$0xf] %vm2113, %v2068
        %2134 = vst.msk [vmem:[%s273 + $0x50] sm:$0xf] %vm2113, %v2069
        %2135 = vst.msk [vmem:[%s273 + $0x54] sm:$0xf] %vm2113, %v2070
        %2136 = vst.msk [vmem:[%s273 + $0x58] sm:$0xf] %vm2113, %v2071
        %2137 = vst.msk [vmem:[%s273 + $0x5c] sm:$0xf] %vm2113, %v2072
        %2138 = vst.msk [vmem:[%s273 + $0x60] sm:$0xf] %vm2113, %v2073
        %2139 = vst.msk [vmem:[%s273 + $0x64] sm:$0xf] %vm2113, %v2074
        %2140 = vst.msk [vmem:[%s273 + $0x68] sm:$0xf] %vm2113, %v2075
        %2141 = vst.msk [vmem:[%s273 + $0x6c] sm:$0xf] %vm2113, %v2076
        %2142 = vst.msk [vmem:[%s273 + $0x70] sm:$0xf] %vm2113, %v2077
        %2143 = vst.msk [vmem:[%s273 + $0x74] sm:$0xf] %vm2113, %v2078
        %2144 = vst.msk [vmem:[%s273 + $0x78] sm:$0xf] %vm2113, %v2079
        %2145 = vst.msk [vmem:[%s273 + $0x7c] sm:$0xf] %vm2113, %v2080
      $region44: #{tpu_custom_call.1} parent=35 // pred_fallthru
        _
      %s2146 = sadd.s32 %s20, %s21
      %s2147 = smul.u32 32, %s2146
      %p2148 = scmp.lt.s32.totalorder %s2147, 63
      %s2149 = scalar_select %p2148, %s2147, 63
      %s2150 = smul.addr %s2149, 4
      %s2151 = scalar_lea.vmem %s4, %s2150
      // Predicated region
      $region45: #{tpu_custom_call.1} parent=35 // pred_check
        %p2152 = pneg %p152
      $region46: #{tpu_custom_call.1} parent=35 // pred_check_branch
        %2154 = sbr.rel (%p2152) target = $region48
      $region47: #{tpu_custom_call.1} parent=35 // pred_region
        %s2155 = sadd.s32 %s20, %s21
        %s2156 = smul.u32 32, %s2155
      $region48: #{tpu_custom_call.1} parent=35 // pred_fallthru
        _
    $region36: #{tpu_custom_call.1} parent=5 // pred_fallthru
      _
    %p2157 = scmp.le.s32.totalorder 2, %s10
    // Predicated region
    $region49: #{tpu_custom_call.1} parent=5 // pred_check
      %p2158 = pneg %p2157
    $region50: #{tpu_custom_call.1} parent=5 // pred_check_branch
      %2160 = sbr.rel (%p2158) target = $region52
    $region51: #{tpu_custom_call.1} parent=5 // pred_region
      %s2161 = ssub.s32 %s10, 2
      // Predicated region
      $region53: #{tpu_custom_call.1} parent=51 // pred_check
        %p2162 = pneg %p158
      $region54: #{tpu_custom_call.1} parent=51 // pred_check_branch
        %2164 = sbr.rel (%p2162) target = $region56
      $region55: #{tpu_custom_call.1} parent=51 // pred_region
        %s2165 = sadd.s32 %s23, %s24
        %s2166 = smul.u32 32, %s2165
        %p2167 = scmp.lt.s32.totalorder %s2166, 63
        %s2168 = scalar_select %p2167, %s2166, 63
        %s2169 = smul.addr %s2168, 4
        %s2170 = scalar_lea.vmem %s4, %s2169
      $region56: #{tpu_custom_call.1} parent=51 // pred_fallthru
        _
    $region52: #{tpu_custom_call.1} parent=5 // pred_fallthru
      _
  $region6: #{tpu_custom_call.1} parent=0 // loop_footer
    %s14 = sadd.s32 1, %s10
  $region7: #{tpu_custom_call.1} parent=0 // loop_footer_branch
    %9 = sbr.rel target = $region3
  $region8: #{tpu_custom_call.1} parent=0 // loop_exit
    _

</llo_original>
